<compile_context>
chip_gen: v6e
topology: v6e:2x2x1
jax: 0.10.0
libtpu: 0.0.40
codegen_flags: <defaults>
</compile_context>

<pallas_src>
import jax
import jax.numpy as jnp
from jax.experimental import pallas as pl
from jax.experimental.pallas import tpu as pltpu

PAD_IDX = 0
UNK_IDX = 1
NEG_FILL = -1000000000.0


def _att_kernel(emb_ref, mask_ref, wk_ref, wq_ref, bq_ref,
                wout_ref, bout_ref, embv_ref, out_ref, hid_ref):
    # emb_ref : (TB, S, E) bf16  masked embeddings for this batch tile
    # mask_ref: (TB, S)    f32   0/1 token mask
    # wk_ref  : (E, E)     bf16  (layout: x @ wk)
    # wq_ref  : (E, E)     bf16
    # bq_ref  : (1, E)     f32
    # wout_ref: (2E, E)    bf16
    # bout_ref: (1, E)     f32
    # embv_ref: (TV, E)    bf16  vocab tile of the embedding table (untransposed)
    # out_ref : (TB, TV)   f32   logits tile
    # hid_ref : (TB, E)    bf16  VMEM scratch, persists across vocab grid steps

    @pl.when(pl.program_id(1) == 0)
    def _compute_hidden():
        x = emb_ref[...]                               # (TB, S, E) bf16
        TB, S, E = x.shape
        x2 = x.reshape(TB * S, E)                      # batch the K/Q matmuls

        k = jax.nn.sigmoid(jnp.dot(x2, wk_ref[...],
                                   preferred_element_type=jnp.float32))
        q = jax.nn.sigmoid(jnp.dot(x2, wq_ref[...],
                                   preferred_element_type=jnp.float32)
                           + bq_ref[...])
        inv_sqrt_e = 1.0 / jnp.sqrt(jnp.float32(E))

        kb = k.reshape(TB, S, E)
        qb = q.reshape(TB, S, E)

        # self_energy[b, i, j] = sigmoid(k[b, i] . q[b, j]) / sqrt(E)
        s = jnp.einsum('bie,bje->bij',
                       kb.astype(jnp.bfloat16), qb.astype(jnp.bfloat16),
                       preferred_element_type=jnp.float32)
        s = jax.nn.sigmoid(s) * inv_sqrt_e             # (TB, S, S)

        # mean over off-diagonal == (row-sum - diagonal) / S   (no SxS iota/masks)
        diag = jax.nn.sigmoid(jnp.sum(kb * qb, axis=-1)) * inv_sqrt_e   # (TB, S)
        energy = (jnp.sum(s, axis=-1) - diag) * (1.0 / S)               # (TB, S)

        energy = jnp.where(mask_ref[...] == 0.0, NEG_FILL, energy)

        # softmax over the sequence axis
        e = energy - jnp.max(energy, axis=-1, keepdims=True)
        p = jnp.exp(e)
        p = p * pl.reciprocal(jnp.sum(p, axis=-1, keepdims=True), approx=True)

        # global context on the MXU: sg[b] = sum_s p[b, s] * x[b, s, :]
        sg = jnp.einsum('bqs,bse->bqe',
                        p.astype(jnp.bfloat16).reshape(TB, 1, S), x,
                        preferred_element_type=jnp.float32).reshape(TB, E)
        sl = x[:, S - 1, :]                            # (TB, E) bf16, last token

        # hidden = cat([sg, sl]) @ Wout + bout   (split matmul instead of concat)
        hidden = (jnp.dot(sg.astype(jnp.bfloat16), wout_ref[:E, :],
                          preferred_element_type=jnp.float32)
                  + jnp.dot(sl, wout_ref[E:, :],
                            preferred_element_type=jnp.float32)
                  + bout_ref[...])                     # (TB, E) f32
        hid_ref[...] = hidden.astype(jnp.bfloat16)

    # vocab projection for this (batch, vocab) tile: hidden @ emb_tile.T
    out_ref[...] = jax.lax.dot_general(
        hid_ref[...], embv_ref[...], (((1,), (1,)), ((), ())),
        preferred_element_type=jnp.float32)


def _round_up(n, m):
    return (n + m - 1) // m * m


def model_forward(inputs, params, *, tb=8, tv=2048):
    """inputs: (B, S) int32 token ids.  Returns (B, V) float32 logits."""
    emb_w = params["emb_w"]          # (V, E) f32
    wk_t = params["wk_t"]            # (E, E)   stored transposed: x @ wk_t
    wq_t = params["wq_t"]            # (E, E)
    bq = params["bq"]                # (1, E)
    wout_t = params["wout_t"]        # (2E, E)
    bout = params["bout"]            # (1, E)

    B, S = inputs.shape
    V, E = emb_w.shape

    TB = min(tb, B)
    Bp = _round_up(B, TB)
    TV = V if V <= tv else tv
    Vp = _round_up(V, TV)

    # Token mask + embedding gather stay in XLA glue; the mask multiply is folded
    # here so the kernel never sees a lane-sparse (..., S, 1) operand.
    mask = ((inputs != PAD_IDX) & (inputs != UNK_IDX)).astype(jnp.float32)   # (B, S)
    embedded = (jnp.take(emb_w, inputs, axis=0)
                * mask[..., None]).astype(jnp.bfloat16)                      # (B, S, E)
    # TODO(synk): the gather could be pulled in-kernel (scalar-prefetched token ids
    # + DMA gather) to save one (B, S, E) HBM round trip; kept in XLA for clarity.

    if Bp != B:
        embedded = jnp.pad(embedded, ((0, Bp - B), (0, 0), (0, 0)))
        mask = jnp.pad(mask, ((0, Bp - B), (0, 0)))

    emb_bf = emb_w.astype(jnp.bfloat16)              # (V, E), NOT transposed
    if Vp != V:
        emb_bf = jnp.pad(emb_bf, ((0, Vp - V), (0, 0)))

    wk_bf = wk_t.astype(jnp.bfloat16)
    wq_bf = wq_t.astype(jnp.bfloat16)
    wout_bf = wout_t.astype(jnp.bfloat16)

    grid = (Bp // TB, Vp // TV)

    grid_spec = pltpu.PrefetchScalarGridSpec(
        num_scalar_prefetch=0,
        grid=grid,
        in_specs=[
            pl.BlockSpec((TB, S, E), lambda b, v: (b, 0, 0)),   # masked embeddings
            pl.BlockSpec((TB, S), lambda b, v: (b, 0)),         # token mask
            # TODO(synk): constant-index weights could take pipeline_mode=pl.Buffered(1)
            # to drop their second VMEM buffer; default buffering kept for portability.
            pl.BlockSpec((E, E), lambda b, v: (0, 0)),          # wk_t (bf16)
            pl.BlockSpec((E, E), lambda b, v: (0, 0)),          # wq_t (bf16)
            pl.BlockSpec((1, E), lambda b, v: (0, 0)),          # bq
            pl.BlockSpec((2 * E, E), lambda b, v: (0, 0)),      # wout_t (bf16)
            pl.BlockSpec((1, E), lambda b, v: (0, 0)),          # bout
            pl.BlockSpec((TV, E), lambda b, v: (v, 0)),         # vocab tile of emb_w
        ],
        out_specs=pl.BlockSpec((TB, TV), lambda b, v: (b, v)),
        scratch_shapes=[pltpu.VMEM((TB, E), jnp.bfloat16)],
    )

    out = pl.pallas_call(
        _att_kernel,
        out_shape=jax.ShapeDtypeStruct((Bp, Vp), jnp.float32),
        grid_spec=grid_spec,
        compiler_params=pltpu.CompilerParams(
            dimension_semantics=("parallel", "arbitrary")),
    )(embedded, mask, wk_bf, wq_bf, bq, wout_bf, bout, emb_bf)

    return out[:B, :V]


def reference_forward(inputs, params):
    """Pure-JAX f32 reference of the PyTorch forward (for verification)."""
    emb_w = params["emb_w"]
    E = emb_w.shape[1]
    S = inputs.shape[1]
    mask = ((inputs != PAD_IDX) & (inputs != UNK_IDX)).astype(jnp.float32)[..., None]
    embedded = emb_w[inputs] * mask
    k = jax.nn.sigmoid(embedded @ params["wk_t"])
    q = jax.nn.sigmoid(embedded @ params["wq_t"] + params["bq"])
    s = jax.nn.sigmoid(k @ jnp.swapaxes(q, -1, -2)) / jnp.sqrt(jnp.float32(E))
    offd = (1.0 - jnp.eye(S, dtype=jnp.float32))[None]
    energy = jnp.mean(offd * s, axis=-1, keepdims=True)
    energy = jnp.where(mask == 0.0, NEG_FILL, energy)
    p = jax.nn.softmax(energy, axis=1)
    sg = jnp.sum(p * embedded, axis=1)
    sl = embedded[:, -1, :]
    hidden = jnp.concatenate([sg, sl], axis=-1) @ params["wout_t"] + params["bout"]
    return hidden @ emb_w.T


def init_params(key, vocab_size, emb_dim):
    ks = jax.random.split(key, 6)
    emb_w = jax.random.normal(ks[0], (vocab_size, emb_dim), jnp.float32)
    emb_w = emb_w.at[PAD_IDX].set(0.0)   # padding_idx row is zero
    scale = 1.0 / jnp.sqrt(jnp.float32(emb_dim))
    return {
        "emb_w": emb_w,
        "wk_t": jax.random.uniform(ks[1], (emb_dim, emb_dim), jnp.float32, -scale, scale),
        "wq_t": jax.random.uniform(ks[2], (emb_dim, emb_dim), jnp.float32, -scale, scale),
        "bq": jax.random.uniform(ks[3], (1, emb_dim), jnp.float32, -scale, scale),
        "wout_t": jax.random.uniform(ks[4], (2 * emb_dim, emb_dim), jnp.float32, -scale, scale),
        "bout": jax.random.uniform(ks[5], (1, emb_dim), jnp.float32, -scale, scale),
        # TODO(synk): _fcv (Linear(v_dim, 1)) is defined in AdditiveAttention.__init__
        # but never used in forward, so it is intentionally omitted here.
    }


if __name__ == "__main__":
    B, S = 16, 8
    VOCAB, EMB = 512, 128

    key = jax.random.PRNGKey(0)
    k_inp, k_par = jax.random.split(key)
    inputs = jax.random.randint(k_inp, (B, S), 0, VOCAB, dtype=jnp.int32)
    params = init_params(k_par, VOCAB, EMB)

    # tb=8, tv=256 -> grid (2, 2): exercises both the batch and vocab tiling.
    out = model_forward(inputs, params, tb=8, tv=256)
    out = jax.block_until_ready(out)

    ref = reference_forward(inputs, params)
    assert out.shape == (B, VOCAB), out.shape
    # bf16 MXU operands with f32 accumulation -> compare at bf16-level tolerance.
    assert jnp.allclose(out, ref, atol=0.5, rtol=0.05), float(jnp.max(jnp.abs(out - ref)))

    print("KERNEL_OK")
</pallas_src>

<mosaic_0001>
module attributes {stable_mosaic.version = 11 : i64} {
  func.func @_att_kernel(%arg0: i32, %arg1: i32, %arg2: memref<8x8x128xbf16, #tpu.memory_space<vmem>>, %arg3: memref<8x8xf32, #tpu.memory_space<vmem>>, %arg4: memref<128x128xbf16, #tpu.memory_space<vmem>>, %arg5: memref<128x128xbf16, #tpu.memory_space<vmem>>, %arg6: memref<1x128xf32, #tpu.memory_space<vmem>>, %arg7: memref<256x128xbf16, #tpu.memory_space<vmem>>, %arg8: memref<1x128xf32, #tpu.memory_space<vmem>>, %arg9: memref<256x128xbf16, #tpu.memory_space<vmem>>, %arg10: memref<8x256xf32, #tpu.memory_space<vmem>>, %arg11: memref<8x128xbf16, #tpu.memory_space<vmem>>) attributes {dimension_semantics = [#tpu.dimension_semantics<parallel>, #tpu.dimension_semantics<arbitrary>], iteration_bounds = array<i64: 2, 2>, scalar_prefetch = 0 : i64, scratch_operands = 1 : i64, tpu.core_type = #tpu.core_type<tc>, window_params = [{transform_indices = @transform_0, window_bounds = array<i64: 8, 8, 128>}, {transform_indices = @transform_1, window_bounds = array<i64: 8, 8>}, {pipeline_mode = #tpu.pipeline_mode<synchronous>, transform_indices = @transform_2, window_bounds = array<i64: 128, 128>}, {pipeline_mode = #tpu.pipeline_mode<synchronous>, transform_indices = @transform_3, window_bounds = array<i64: 128, 128>}, {pipeline_mode = #tpu.pipeline_mode<synchronous>, transform_indices = @transform_4, window_bounds = array<i64: 1, 128>}, {pipeline_mode = #tpu.pipeline_mode<synchronous>, transform_indices = @transform_5, window_bounds = array<i64: 256, 128>}, {pipeline_mode = #tpu.pipeline_mode<synchronous>, transform_indices = @transform_6, window_bounds = array<i64: 1, 128>}, {transform_indices = @transform_7, window_bounds = array<i64: 256, 128>}, {transform_indices = @transform_8, window_bounds = array<i64: 8, 256>}]} {
    %c0_i32 = arith.constant 0 : i32
    %0 = arith.cmpi eq, %arg1, %c0_i32 : i32
    %1 = arith.extui %0 : i1 to i32
    %c0_i32_0 = arith.constant 0 : i32
    %2 = arith.cmpi ne, %1, %c0_i32_0 : i32
    scf.if %2 {
      %c0_6 = arith.constant 0 : index
      %c0_7 = arith.constant 0 : index
      %c0_8 = arith.constant 0 : index
      %7 = vector.load %arg2[%c0_6, %c0_7, %c0_8] : memref<8x8x128xbf16, #tpu.memory_space<vmem>>, vector<8x8x128xbf16>
      %8 = vector.shape_cast %7 : vector<8x8x128xbf16> to vector<64x128xbf16>
      %c0_9 = arith.constant 0 : index
      %c0_10 = arith.constant 0 : index
      %9 = vector.load %arg4[%c0_9, %c0_10] : memref<128x128xbf16, #tpu.memory_space<vmem>>, vector<128x128xbf16>
      %cst_11 = arith.constant dense<0.000000e+00> : vector<64x128xf32>
      %10 = tpu.matmul %8, %9, %cst_11 {dimension_numbers = #tpu.dot_dimension_numbers<[1], [0], [0], [1], [0, 0, 1, 1], [], []>} : vector<64x128xbf16>, vector<128x128xbf16>, vector<64x128xf32> -> vector<64x128xf32>
      %11 = arith.negf %10 : vector<64x128xf32>
      %12 = math.exp %11 : vector<64x128xf32>
      %cst_12 = arith.constant 1.000000e+00 : f32
      %13 = vector.broadcast %cst_12 : f32 to vector<64x128xf32>
      %14 = arith.addf %13, %12 : vector<64x128xf32>
      %15 = arith.divf %13, %14 : vector<64x128xf32>
      %c0_13 = arith.constant 0 : index
      %c0_14 = arith.constant 0 : index
      %16 = vector.load %arg5[%c0_13, %c0_14] : memref<128x128xbf16, #tpu.memory_space<vmem>>, vector<128x128xbf16>
      %cst_15 = arith.constant dense<0.000000e+00> : vector<64x128xf32>
      %17 = tpu.matmul %8, %16, %cst_15 {dimension_numbers = #tpu.dot_dimension_numbers<[1], [0], [0], [1], [0, 0, 1, 1], [], []>} : vector<64x128xbf16>, vector<128x128xbf16>, vector<64x128xf32> -> vector<64x128xf32>
      %c0_16 = arith.constant 0 : index
      %c0_17 = arith.constant 0 : index
      %18 = vector.load %arg6[%c0_16, %c0_17] : memref<1x128xf32, #tpu.memory_space<vmem>>, vector<1x128xf32>
      %19 = vector.broadcast %18 : vector<1x128xf32> to vector<64x128xf32>
      %20 = arith.addf %17, %19 : vector<64x128xf32>
      %21 = arith.negf %20 : vector<64x128xf32>
      %22 = math.exp %21 : vector<64x128xf32>
      %cst_18 = arith.constant 1.000000e+00 : f32
      %23 = vector.broadcast %cst_18 : f32 to vector<64x128xf32>
      %24 = arith.addf %23, %22 : vector<64x128xf32>
      %25 = arith.divf %23, %24 : vector<64x128xf32>
      %cst_19 = arith.constant 1.280000e+02 : f32
      %26 = math.sqrt %cst_19 : f32
      %cst_20 = arith.constant 1.000000e+00 : f32
      %27 = arith.divf %cst_20, %26 : f32
      %28 = vector.shape_cast %15 : vector<64x128xf32> to vector<8x8x128xf32>
      %29 = vector.shape_cast %25 : vector<64x128xf32> to vector<8x8x128xf32>
      %30 = arith.truncf %28 : vector<8x8x128xf32> to vector<8x8x128xbf16>
      %31 = arith.truncf %29 : vector<8x8x128xf32> to vector<8x8x128xbf16>
      "tpu.trace_start"() <{level = 10 : i32, message = "bie,bje->bij"}> : () -> ()
      %cst_21 = arith.constant dense<0.000000e+00> : vector<8x8x8xf32>
      %32 = tpu.matmul %30, %31, %cst_21 {dimension_numbers = #tpu.dot_dimension_numbers<[2], [2], [1], [1], [0, 0, 0, 1, 1, 1], [0], [0]>} : vector<8x8x128xbf16>, vector<8x8x128xbf16>, vector<8x8x8xf32> -> vector<8x8x8xf32>
      "tpu.trace_stop"() : () -> ()
      %33 = arith.negf %32 : vector<8x8x8xf32>
      %34 = math.exp %33 : vector<8x8x8xf32>
      %cst_22 = arith.constant 1.000000e+00 : f32
      %35 = vector.broadcast %cst_22 : f32 to vector<8x8x8xf32>
      %36 = arith.addf %35, %34 : vector<8x8x8xf32>
      %37 = arith.divf %35, %36 : vector<8x8x8xf32>
      %38 = vector.broadcast %27 : f32 to vector<8x8x8xf32>
      %39 = arith.mulf %37, %38 : vector<8x8x8xf32>
      %40 = arith.mulf %28, %29 : vector<8x8x128xf32>
      %cst_23 = arith.constant dense<0.000000e+00> : vector<8x8xf32>
      %41 = vector.multi_reduction <add>, %40, %cst_23 [2] : vector<8x8x128xf32> to vector<8x8xf32>
      %42 = arith.negf %41 : vector<8x8xf32>
      %43 = math.exp %42 : vector<8x8xf32>
      %cst_24 = arith.constant 1.000000e+00 : f32
      %44 = vector.broadcast %cst_24 : f32 to vector<8x8xf32>
      %45 = arith.addf %44, %43 : vector<8x8xf32>
      %46 = arith.divf %44, %45 : vector<8x8xf32>
      %47 = vector.broadcast %27 : f32 to vector<8x8xf32>
      %48 = arith.mulf %46, %47 : vector<8x8xf32>
      %cst_25 = arith.constant dense<0.000000e+00> : vector<8x8xf32>
      %49 = vector.multi_reduction <add>, %39, %cst_25 [2] : vector<8x8x8xf32> to vector<8x8xf32>
      %50 = arith.subf %49, %48 : vector<8x8xf32>
      %cst_26 = arith.constant 1.250000e-01 : f32
      %51 = vector.broadcast %cst_26 : f32 to vector<8x8xf32>
      %52 = arith.mulf %50, %51 : vector<8x8xf32>
      %c0_27 = arith.constant 0 : index
      %c0_28 = arith.constant 0 : index
      %53 = vector.load %arg3[%c0_27, %c0_28] : memref<8x8xf32, #tpu.memory_space<vmem>>, vector<8x8xf32>
      %cst_29 = arith.constant 0.000000e+00 : f32
      %54 = vector.broadcast %cst_29 : f32 to vector<8x8xf32>
      %55 = arith.cmpf oeq, %53, %54 : vector<8x8xf32>
      %cst_30 = arith.constant -1.000000e+09 : f32
      %56 = vector.broadcast %cst_30 : f32 to vector<8x8xf32>
      %57 = arith.select %55, %56, %52 : vector<8x8xi1>, vector<8x8xf32>
      %cst_31 = arith.constant dense<0xFF800000> : vector<8xf32>
      %58 = vector.multi_reduction <maximumf>, %57, %cst_31 [1] : vector<8x8xf32> to vector<8xf32>
      %59 = vector.shape_cast %58 : vector<8xf32> to vector<8x1xf32>
      %60 = vector.broadcast %59 : vector<8x1xf32> to vector<8x8xf32>
      %61 = arith.subf %57, %60 : vector<8x8xf32>
      %62 = math.exp %61 : vector<8x8xf32>
      %cst_32 = arith.constant dense<0.000000e+00> : vector<8xf32>
      %63 = vector.multi_reduction <add>, %62, %cst_32 [1] : vector<8x8xf32> to vector<8xf32>
      %64 = vector.shape_cast %63 : vector<8xf32> to vector<8x1xf32>
      %65 = tpu.reciprocal %64 {approx = true} : vector<8x1xf32> -> vector<8x1xf32>
      %66 = vector.broadcast %65 : vector<8x1xf32> to vector<8x8xf32>
      %67 = arith.mulf %62, %66 : vector<8x8xf32>
      %68 = arith.truncf %67 : vector<8x8xf32> to vector<8x8xbf16>
      %69 = vector.shape_cast %68 : vector<8x8xbf16> to vector<8x1x8xbf16>
      "tpu.trace_start"() <{level = 10 : i32, message = "bqs,bse->bqe"}> : () -> ()
      %cst_33 = arith.constant dense<0.000000e+00> : vector<8x1x128xf32>
      %70 = tpu.matmul %69, %7, %cst_33 {dimension_numbers = #tpu.dot_dimension_numbers<[2], [1], [1], [2], [0, 0, 0, 1, 1, 2], [0], [0]>} : vector<8x1x8xbf16>, vector<8x8x128xbf16>, vector<8x1x128xf32> -> vector<8x1x128xf32>
      "tpu.trace_stop"() : () -> ()
      %71 = vector.shape_cast %70 : vector<8x1x128xf32> to vector<8x128xf32>
      %72 = vector.extract_strided_slice %7 {offsets = [0, 7, 0], sizes = [8, 1, 128], strides = [1, 1, 1]} : vector<8x8x128xbf16> to vector<8x1x128xbf16>
      %73 = vector.shape_cast %72 : vector<8x1x128xbf16> to vector<8x128xbf16>
      %74 = arith.truncf %71 : vector<8x128xf32> to vector<8x128xbf16>
      %c0_34 = arith.constant 0 : index
      %c0_35 = arith.constant 0 : index
      %75 = vector.load %arg7[%c0_34, %c0_35] : memref<256x128xbf16, #tpu.memory_space<vmem>>, vector<128x128xbf16>
      %cst_36 = arith.constant dense<0.000000e+00> : vector<8x128xf32>
      %76 = tpu.matmul %74, %75, %cst_36 {dimension_numbers = #tpu.dot_dimension_numbers<[1], [0], [0], [1], [0, 0, 1, 1], [], []>} : vector<8x128xbf16>, vector<128x128xbf16>, vector<8x128xf32> -> vector<8x128xf32>
      %c128 = arith.constant 128 : index
      %c0_37 = arith.constant 0 : index
      %77 = vector.load %arg7[%c128, %c0_37] : memref<256x128xbf16, #tpu.memory_space<vmem>>, vector<128x128xbf16>
      %cst_38 = arith.constant dense<0.000000e+00> : vector<8x128xf32>
      %78 = tpu.matmul %73, %77, %cst_38 {dimension_numbers = #tpu.dot_dimension_numbers<[1], [0], [0], [1], [0, 0, 1, 1], [], []>} : vector<8x128xbf16>, vector<128x128xbf16>, vector<8x128xf32> -> vector<8x128xf32>
      %79 = arith.addf %76, %78 : vector<8x128xf32>
      %c0_39 = arith.constant 0 : index
      %c0_40 = arith.constant 0 : index
      %80 = vector.load %arg8[%c0_39, %c0_40] : memref<1x128xf32, #tpu.memory_space<vmem>>, vector<1x128xf32>
      %81 = vector.broadcast %80 : vector<1x128xf32> to vector<8x128xf32>
      %82 = arith.addf %79, %81 : vector<8x128xf32>
      %83 = arith.truncf %82 : vector<8x128xf32> to vector<8x128xbf16>
      %c0_41 = arith.constant 0 : index
      %c0_42 = arith.constant 0 : index
      %84 = vector.load %arg11[%c0_41, %c0_42] : memref<8x128xbf16, #tpu.memory_space<vmem>>, vector<8x128xbf16>
      tpu.vector_store %arg11[%c0_41, %c0_42], %83 {strides = array<i32>} : memref<8x128xbf16, #tpu.memory_space<vmem>>, vector<8x128xbf16>,
    } else {
    }
    %c0 = arith.constant 0 : index
    %c0_1 = arith.constant 0 : index
    %3 = vector.load %arg11[%c0, %c0_1] : memref<8x128xbf16, #tpu.memory_space<vmem>>, vector<8x128xbf16>
    %c0_2 = arith.constant 0 : index
    %c0_3 = arith.constant 0 : index
    %4 = vector.load %arg9[%c0_2, %c0_3] : memref<256x128xbf16, #tpu.memory_space<vmem>>, vector<256x128xbf16>
    %cst = arith.constant dense<0.000000e+00> : vector<8x256xf32>
    %5 = tpu.matmul %3, %4, %cst {dimension_numbers = #tpu.dot_dimension_numbers<[1], [1], [0], [0], [0, 0, 1, 0], [], []>} : vector<8x128xbf16>, vector<256x128xbf16>, vector<8x256xf32> -> vector<8x256xf32>
    %c0_4 = arith.constant 0 : index
    %c0_5 = arith.constant 0 : index
    %6 = vector.load %arg10[%c0_4, %c0_5] : memref<8x256xf32, #tpu.memory_space<vmem>>, vector<8x256xf32>
    tpu.vector_store %arg10[%c0_4, %c0_5], %5 {strides = array<i32>} : memref<8x256xf32, #tpu.memory_space<vmem>>, vector<8x256xf32>,
    return
  }
  func.func @transform_0(%arg0: i32, %arg1: i32) -> (i32, i32, i32) {
    %c0_i32 = arith.constant 0 : i32
    %c0_i32_0 = arith.constant 0 : i32
    %c0_i32_1 = arith.constant 0 : i32
    return %arg0, %c0_i32, %c0_i32_0 : i32, i32, i32
  }
  func.func @transform_1(%arg0: i32, %arg1: i32) -> (i32, i32) {
    %c0_i32 = arith.constant 0 : i32
    %c0_i32_0 = arith.constant 0 : i32
    return %arg0, %c0_i32 : i32, i32
  }
  func.func @transform_2(%arg0: i32, %arg1: i32) -> (i32, i32) {
    %c0_i32 = arith.constant 0 : i32
    %c0_i32_0 = arith.constant 0 : i32
    %c0_i32_1 = arith.constant 0 : i32
    return %c0_i32, %c0_i32_0 : i32, i32
  }
  func.func @transform_3(%arg0: i32, %arg1: i32) -> (i32, i32) {
    %c0_i32 = arith.constant 0 : i32
    %c0_i32_0 = arith.constant 0 : i32
    %c0_i32_1 = arith.constant 0 : i32
    return %c0_i32, %c0_i32_0 : i32, i32
  }
  func.func @transform_4(%arg0: i32, %arg1: i32) -> (i32, i32) {
    %c0_i32 = arith.constant 0 : i32
    %c0_i32_0 = arith.constant 0 : i32
    %c0_i32_1 = arith.constant 0 : i32
    return %c0_i32, %c0_i32_0 : i32, i32
  }
  func.func @transform_5(%arg0: i32, %arg1: i32) -> (i32, i32) {
    %c0_i32 = arith.constant 0 : i32
    %c0_i32_0 = arith.constant 0 : i32
    %c0_i32_1 = arith.constant 0 : i32
    return %c0_i32, %c0_i32_0 : i32, i32
  }
  func.func @transform_6(%arg0: i32, %arg1: i32) -> (i32, i32) {
    %c0_i32 = arith.constant 0 : i32
    %c0_i32_0 = arith.constant 0 : i32
    %c0_i32_1 = arith.constant 0 : i32
    return %c0_i32, %c0_i32_0 : i32, i32
  }
  func.func @transform_7(%arg0: i32, %arg1: i32) -> (i32, i32) {
    %c0_i32 = arith.constant 0 : i32
    %c0_i32_0 = arith.constant 0 : i32
    return %arg1, %c0_i32 : i32, i32
  }
  func.func @transform_8(%arg0: i32, %arg1: i32) -> (i32, i32) {
    %c0_i32 = arith.constant 0 : i32
    return %arg0, %arg1 : i32, i32
  }
}

</mosaic_0001>

<llo_original>
// kernel: tpu_custom_call.1
$region0: #{tpu_custom_call.1}
  #allocation0 [shape = 'u32[]', space=smem, size = 0x4, offset = 0x4, fixed_abs, tag = 'smem constant byte address 0x4 - core index']
  #allocation1 [shape = 'u32[144,128]{1,0:T(1,128)}', space=vmem, size = 0x12000, scoped, tag = 'internal scratch']
  #allocation2 [shape = 'bf16[8,128]{1,0:T(8,128)(2,1)}', space=vmem, size = 0x800, scoped, tag = 'scratch operand']
  %s0 = inlined_call_operand.hbm [shape: bf16[16,8,128], index: 0, kind: input, shape index: {}]
  %s1 = inlined_call_operand.vmem [shape: f32[16,8], index: 1, kind: input, shape index: {}]
  %s2 = inlined_call_operand.hbm [shape: bf16[128,128], index: 2, kind: input, shape index: {}]
  %s3 = inlined_call_operand.hbm [shape: bf16[128,128], index: 3, kind: input, shape index: {}]
  %s4 = inlined_call_operand.vmem [shape: f32[1,128], index: 4, kind: input, shape index: {}]
  %s5 = inlined_call_operand.hbm [shape: bf16[256,128], index: 5, kind: input, shape index: {}]
  %s6 = inlined_call_operand.vmem [shape: f32[1,128], index: 6, kind: input, shape index: {}]
  %s7 = inlined_call_operand.hbm [shape: bf16[512,128], index: 7, kind: input, shape index: {}]
  %s8 = inlined_call_operand.hbm [shape: f32[16,512], index: 8, kind: output, shape index: {}]
  %s9 = sld [smem:[#allocation0]]
  $region89: #{tpu_custom_call.1} parent=0
    _
  %s11 = ssub.s32 1, %s9
  %s12 = scalar_select 0, %s11, %s9
  $region1: #{tpu_custom_call.1} parent=0
    #allocation3 [shape = 'u8[32768]{0}', space=vmem, size = 0x8000, scoped, tag = 'input window, operand 0']
    #allocation4 [shape = 's32[2]{0}', space=sflag, size = 0x8, scoped, tag = 'scoped memory for tpu_custom_call.1']
    #allocation5 [shape = 's32[2]{0}', space=sflag, size = 0x8, scoped, tag = 'scoped memory for tpu_custom_call.1']
    #allocation6 [shape = 'u8[32768]{0}', space=vmem, size = 0x8000, scoped, tag = 'input window, operand 2, single buffered']
    #allocation7 [shape = 's32[1]{0}', space=sflag, size = 0x4, scoped, tag = 'scoped memory for tpu_custom_call.1']
    #allocation8 [shape = 'u8[32768]{0}', space=vmem, size = 0x8000, scoped, tag = 'input window, operand 3, single buffered']
    #allocation9 [shape = 'u8[65536]{0}', space=vmem, size = 0x10000, scoped, tag = 'input window, operand 5, single buffered']
    #allocation10 [shape = 's32[1]{0}', space=sflag, size = 0x4, scoped, tag = 'scoped memory for tpu_custom_call.1']
    #allocation11 [shape = 'u8[131072]{0}', space=vmem, size = 0x20000, scoped, tag = 'input window, operand 7']
    #allocation12 [shape = 'u8[16384]{0}', space=vmem, size = 0x4000, scoped, tag = 'output window, operand 0']
    %13 = vsyncpa [#allocation4], 0
    %s14 = scalar_lea.sflag [#allocation4], 1
    %15 = vsyncpa %s14, 0
    %16 = vsyncpa [#allocation7], 0
    %17 = vsyncpa [#allocation10], 0
    %18 = vsyncpa [#allocation5], 0
    %s19 = scalar_lea.sflag [#allocation5], 1
    %20 = vsyncpa %s19, 0
    loop: start=0, step=1, limit=6
    $region2: #{tpu_custom_call.1} parent=1 // loop_pre_header
      _
    $region3: #{tpu_custom_call.1} parent=1 // loop_header
      %s22 = sphi 0, %s26
      %p23 = scmp.ge.s32.totalorder %s22, 6
      %s29 = sphi 0, %s41
      %s30 = sphi 0, %s37
      %s31 = sphi 0, %s29
      %s32 = sphi 0, %s30
      %s33 = sphi 0, %s31
      %s34 = sphi 0, %s32
      %s44 = sphi 0, %s46
      %s47 = sphi 0, %s44
      %s48 = sphi 0, %s47
      %s64 = sphi 0, %s48
      %s70 = sphi 0, %s72
      %s73 = sphi 0, %s70
      %s74 = sphi 0, %s73
      %s90 = sphi 0, %s74
      %s94 = sphi 0, %s94
      %s96 = sphi 0, %s94
      %s97 = sphi 0, %s96
      %s111 = sphi 0, %s97
      %s115 = sphi 0, %s115
      %s117 = sphi 0, %s115
      %s118 = sphi 0, %s117
      %s132 = sphi 0, %s118
      %s136 = sphi 0, %s136
      %s138 = sphi 0, %s136
      %s139 = sphi 0, %s138
      %s153 = sphi 0, %s139
      %s157 = sphi 0, %s157
      %s159 = sphi 0, %s157
      %s160 = sphi 0, %s159
      %s174 = sphi 0, %s160
      %s178 = sphi 0, %s178
      %s180 = sphi 0, %s178
      %s181 = sphi 0, %s180
      %s195 = sphi 0, %s181
      %s201 = sphi 0, %s203
      %s204 = sphi 0, %s201
      %s205 = sphi 0, %s204
      %s221 = sphi 0, %s205
      %s229 = sphi 0, %s231
      %s232 = sphi 0, %s229
      %s233 = sphi 0, %s232
      %s249 = sphi 0, %s233
    $region4: #{tpu_custom_call.1} parent=1 // loop_header_branch
      %25 = sbr.rel (%p23) target = $region8
    $region5: #{tpu_custom_call.1} parent=1 // loop_body
      %s27 = ssub.s32 %s22, 1
      %s28 = ssub.s32 %s22, 2
      %s35 = sadd.s32 1, %s30
      %p36 = scmp.ge.s32.totalorder %s35, 2
      %s37 = scalar_select %p36, 0, %s35
      %s38 = sadd.s32 1, %s29
      %s39 = scalar_select %p36, %s38, %s29
      %p40 = scmp.ge.s32.totalorder %s39, 2
      %s41 = scalar_select %p40, 0, %s39
      %s42 = ssub.s32 %s29, %s41
      %p43 = scmp.eq.s32.totalorder %s42, 0
      %s45 = sadd.s32 %s44, 1
      %s46 = scalar_select %p43, %s44, %s45
      %p49 = pneg %p43
      %p50 = scmp.eq.s32.totalorder %s22, 3
      %p51 = por %p49, %p50
      %p52 = scmp.ne.s32.totalorder %s44, %s47
      %p53 = scmp.eq.s32.totalorder %s22, 0
      %p54 = por %p52, %p53
      %p55 = scmp.ne.s32.totalorder %s44, %s47
      %p56 = scmp.eq.s32.totalorder %s27, 3
      %p57 = por %p55, %p56
      %p58 = scmp.ne.s32.totalorder %s47, %s48
      %p59 = scmp.eq.s32.totalorder %s27, 0
      %p60 = por %p58, %p59
      %p61 = scmp.ne.s32.totalorder %s47, %s48
      %p62 = scmp.eq.s32.totalorder %s28, 3
      %p63 = por %p61, %p62
      %p65 = scmp.ne.s32.totalorder %s48, %s64
      %p66 = scmp.eq.s32.totalorder %s28, 0
      %p67 = por %p65, %p66
      %s68 = ssub.s32 %s29, %s41
      %p69 = scmp.eq.s32.totalorder %s68, 0
      %s71 = sadd.s32 %s70, 1
      %s72 = scalar_select %p69, %s70, %s71
      %p75 = pneg %p69
      %p76 = scmp.eq.s32.totalorder %s22, 3
      %p77 = por %p75, %p76
      %p78 = scmp.ne.s32.totalorder %s70, %s73
      %p79 = scmp.eq.s32.totalorder %s22, 0
      %p80 = por %p78, %p79
      %p81 = scmp.ne.s32.totalorder %s70, %s73
      %p82 = scmp.eq.s32.totalorder %s27, 3
      %p83 = por %p81, %p82
      %p84 = scmp.ne.s32.totalorder %s73, %s74
      %p85 = scmp.eq.s32.totalorder %s27, 0
      %p86 = por %p84, %p85
      %p87 = scmp.ne.s32.totalorder %s73, %s74
      %p88 = scmp.eq.s32.totalorder %s28, 3
      %p89 = por %p87, %p88
      %p91 = scmp.ne.s32.totalorder %s74, %s90
      %p92 = scmp.eq.s32.totalorder %s28, 0
      %p93 = por %p91, %p92
      %s95 = sadd.s32 %s94, 1
      %p98 = scmp.eq.s32.totalorder %s22, 3
      %p99 = scmp.ne.s32.totalorder %s94, %s96
      %p100 = scmp.eq.s32.totalorder %s22, 0
      %p101 = por %p99, %p100
      %p102 = scmp.ne.s32.totalorder %s94, %s96
      %p103 = scmp.eq.s32.totalorder %s27, 3
      %p104 = por %p102, %p103
      %p105 = scmp.ne.s32.totalorder %s96, %s97
      %p106 = scmp.eq.s32.totalorder %s27, 0
      %p107 = por %p105, %p106
      %p108 = scmp.ne.s32.totalorder %s96, %s97
      %p109 = scmp.eq.s32.totalorder %s28, 3
      %p110 = por %p108, %p109
      %p112 = scmp.ne.s32.totalorder %s97, %s111
      %p113 = scmp.eq.s32.totalorder %s28, 0
      %p114 = por %p112, %p113
      %s116 = sadd.s32 %s115, 1
      %p119 = scmp.eq.s32.totalorder %s22, 3
      %p120 = scmp.ne.s32.totalorder %s115, %s117
      %p121 = scmp.eq.s32.totalorder %s22, 0
      %p122 = por %p120, %p121
      %p123 = scmp.ne.s32.totalorder %s115, %s117
      %p124 = scmp.eq.s32.totalorder %s27, 3
      %p125 = por %p123, %p124
      %p126 = scmp.ne.s32.totalorder %s117, %s118
      %p127 = scmp.eq.s32.totalorder %s27, 0
      %p128 = por %p126, %p127
      %p129 = scmp.ne.s32.totalorder %s117, %s118
      %p130 = scmp.eq.s32.totalorder %s28, 3
      %p131 = por %p129, %p130
      %p133 = scmp.ne.s32.totalorder %s118, %s132
      %p134 = scmp.eq.s32.totalorder %s28, 0
      %p135 = por %p133, %p134
      %s137 = sadd.s32 %s136, 1
      %p140 = scmp.eq.s32.totalorder %s22, 3
      %p141 = scmp.ne.s32.totalorder %s136, %s138
      %p142 = scmp.eq.s32.totalorder %s22, 0
      %p143 = por %p141, %p142
      %p144 = scmp.ne.s32.totalorder %s136, %s138
      %p145 = scmp.eq.s32.totalorder %s27, 3
      %p146 = por %p144, %p145
      %p147 = scmp.ne.s32.totalorder %s138, %s139
      %p148 = scmp.eq.s32.totalorder %s27, 0
      %p149 = por %p147, %p148
      %p150 = scmp.ne.s32.totalorder %s138, %s139
      %p151 = scmp.eq.s32.totalorder %s28, 3
      %p152 = por %p150, %p151
      %p154 = scmp.ne.s32.totalorder %s139, %s153
      %p155 = scmp.eq.s32.totalorder %s28, 0
      %p156 = por %p154, %p155
      %s158 = sadd.s32 %s157, 1
      %p161 = scmp.eq.s32.totalorder %s22, 3
      %p162 = scmp.ne.s32.totalorder %s157, %s159
      %p163 = scmp.eq.s32.totalorder %s22, 0
      %p164 = por %p162, %p163
      %p165 = scmp.ne.s32.totalorder %s157, %s159
      %p166 = scmp.eq.s32.totalorder %s27, 3
      %p167 = por %p165, %p166
      %p168 = scmp.ne.s32.totalorder %s159, %s160
      %p169 = scmp.eq.s32.totalorder %s27, 0
      %p170 = por %p168, %p169
      %p171 = scmp.ne.s32.totalorder %s159, %s160
      %p172 = scmp.eq.s32.totalorder %s28, 3
      %p173 = por %p171, %p172
      %p175 = scmp.ne.s32.totalorder %s160, %s174
      %p176 = scmp.eq.s32.totalorder %s28, 0
      %p177 = por %p175, %p176
      %s179 = sadd.s32 %s178, 1
      %p182 = scmp.eq.s32.totalorder %s22, 3
      %p183 = scmp.ne.s32.totalorder %s178, %s180
      %p184 = scmp.eq.s32.totalorder %s22, 0
      %p185 = por %p183, %p184
      %p186 = scmp.ne.s32.totalorder %s178, %s180
      %p187 = scmp.eq.s32.totalorder %s27, 3
      %p188 = por %p186, %p187
      %p189 = scmp.ne.s32.totalorder %s180, %s181
      %p190 = scmp.eq.s32.totalorder %s27, 0
      %p191 = por %p189, %p190
      %p192 = scmp.ne.s32.totalorder %s180, %s181
      %p193 = scmp.eq.s32.totalorder %s28, 3
      %p194 = por %p192, %p193
      %p196 = scmp.ne.s32.totalorder %s181, %s195
      %p197 = scmp.eq.s32.totalorder %s28, 0
      %p198 = por %p196, %p197
      %s199 = ssub.s32 %s30, %s37
      %p200 = scmp.eq.s32.totalorder %s199, 0
      %s202 = sadd.s32 %s201, 1
      %s203 = scalar_select %p200, %s201, %s202
      %p206 = pneg %p200
      %p207 = scmp.eq.s32.totalorder %s22, 3
      %p208 = por %p206, %p207
      %p209 = scmp.ne.s32.totalorder %s201, %s204
      %p210 = scmp.eq.s32.totalorder %s22, 0
      %p211 = por %p209, %p210
      %p212 = scmp.ne.s32.totalorder %s201, %s204
      %p213 = scmp.eq.s32.totalorder %s27, 3
      %p214 = por %p212, %p213
      %p215 = scmp.ne.s32.totalorder %s204, %s205
      %p216 = scmp.eq.s32.totalorder %s27, 0
      %p217 = por %p215, %p216
      %p218 = scmp.ne.s32.totalorder %s204, %s205
      %p219 = scmp.eq.s32.totalorder %s28, 3
      %p220 = por %p218, %p219
      %p222 = scmp.ne.s32.totalorder %s205, %s221
      %p223 = scmp.eq.s32.totalorder %s28, 0
      %p224 = por %p222, %p223
      %s225 = ssub.s32 %s29, %s41
      %s226 = ssub.s32 %s30, %s37
      %s227 = sor.u32 %s225, %s226
      %p228 = scmp.eq.s32.totalorder %s227, 0
      %s230 = sadd.s32 %s229, 1
      %s231 = scalar_select %p228, %s229, %s230
      %p234 = pneg %p228
      %p235 = scmp.eq.s32.totalorder %s22, 3
      %p236 = por %p234, %p235
      %p237 = scmp.ne.s32.totalorder %s229, %s232
      %p238 = scmp.eq.s32.totalorder %s22, 0
      %p239 = por %p237, %p238
      %p240 = scmp.ne.s32.totalorder %s229, %s232
      %p241 = scmp.eq.s32.totalorder %s27, 3
      %p242 = por %p240, %p241
      %p243 = scmp.ne.s32.totalorder %s232, %s233
      %p244 = scmp.eq.s32.totalorder %s27, 0
      %p245 = por %p243, %p244
      %p246 = scmp.ne.s32.totalorder %s232, %s233
      %p247 = scmp.eq.s32.totalorder %s28, 3
      %p248 = por %p246, %p247
      %p250 = scmp.ne.s32.totalorder %s233, %s249
      %p251 = scmp.eq.s32.totalorder %s28, 0
      %p252 = por %p250, %p251
      %p253 = scmp.le.s32.totalorder 1, %s22
      %p254 = scmp.lt.s32.totalorder %s22, 5
      %p255 = pnand %p253, %p254
      %p256 = pneg %p255
      // Predicated region
      $region9: #{tpu_custom_call.1} parent=5 // pred_check
        _
      $region10: #{tpu_custom_call.1} parent=5 // pred_check_branch
        %258 = sbr.rel (%p255) target = $region12
      $region11: #{tpu_custom_call.1} parent=5 // pred_region
        %s259 = ssub.s32 %s22, 1
        // Predicated region
        $region13: #{tpu_custom_call.1} parent=11 // pred_check
          %p260 = pneg %p107
        $region14: #{tpu_custom_call.1} parent=11 // pred_check_branch
          %262 = sbr.rel (%p260) target = $region16
        $region15: #{tpu_custom_call.1} parent=11 // pred_region
          %s264 = ssub.s32 1024, 1024
          %265 = vsyncadd [#allocation7], %s264
          %s266 = sshll.u32 [#allocation6], 4
          %s267 = int_to_ptr.vmem [resolvable:$true] %s266
          %272 = dma.hbm_to_vmem [thread:$0]  %s2, 1024, %s267, [#allocation7], 64, 64, 4
        $region16: #{tpu_custom_call.1} parent=11 // pred_fallthru
          _
        // Predicated region
        $region17: #{tpu_custom_call.1} parent=11 // pred_check
          %p273 = pneg %p128
        $region18: #{tpu_custom_call.1} parent=11 // pred_check_branch
          %275 = sbr.rel (%p273) target = $region20
        $region19: #{tpu_custom_call.1} parent=11 // pred_region
          %s277 = ssub.s32 1024, 1024
          %278 = vsyncadd [#allocation7], %s277
          %s279 = sshll.u32 [#allocation8], 4
          %s280 = int_to_ptr.vmem [resolvable:$true] %s279
          %285 = dma.hbm_to_vmem [thread:$0]  %s3, 1024, %s280, [#allocation7], 64, 64, 4
        $region20: #{tpu_custom_call.1} parent=11 // pred_fallthru
          _
        // Predicated region
        $region21: #{tpu_custom_call.1} parent=11 // pred_check
          %p286 = pneg %p149
        $region22: #{tpu_custom_call.1} parent=11 // pred_check_branch
          %288 = sbr.rel (%p286) target = $region24
        $region23: #{tpu_custom_call.1} parent=11 // pred_region
          _
        $region24: #{tpu_custom_call.1} parent=11 // pred_fallthru
          _
        // Predicated region
        $region25: #{tpu_custom_call.1} parent=11 // pred_check
          %p289 = pneg %p170
        $region26: #{tpu_custom_call.1} parent=11 // pred_check_branch
          %291 = sbr.rel (%p289) target = $region28
        $region27: #{tpu_custom_call.1} parent=11 // pred_region
          %s293 = ssub.s32 2048, 2048
          %294 = vsyncadd [#allocation10], %s293
          %s295 = sshll.u32 [#allocation9], 4
          %s296 = int_to_ptr.vmem [resolvable:$true] %s295
          %301 = dma.hbm_to_vmem [thread:$0]  %s5, 2048, %s296, [#allocation10], 64, 64, 4
        $region28: #{tpu_custom_call.1} parent=11 // pred_fallthru
          _
        // Predicated region
        $region29: #{tpu_custom_call.1} parent=11 // pred_check
          %p302 = pneg %p191
        $region30: #{tpu_custom_call.1} parent=11 // pred_check_branch
          %304 = sbr.rel (%p302) target = $region32
        $region31: #{tpu_custom_call.1} parent=11 // pred_region
          _
        $region32: #{tpu_custom_call.1} parent=11 // pred_fallthru
          _
      $region12: #{tpu_custom_call.1} parent=5 // pred_fallthru
        _
      %p305 = scmp.lt.s32.totalorder %s22, 4
      // Predicated region
      $region33: #{tpu_custom_call.1} parent=5 // pred_check
        %p306 = pneg %p305
      $region34: #{tpu_custom_call.1} parent=5 // pred_check_branch
        %308 = sbr.rel (%p306) target = $region36
      $region35: #{tpu_custom_call.1} parent=5 // pred_region
        // Predicated region
        $region37: #{tpu_custom_call.1} parent=35 // pred_check
          %p309 = pneg %p54
        $region38: #{tpu_custom_call.1} parent=35 // pred_check_branch
          %311 = sbr.rel (%p309) target = $region40
        $region39: #{tpu_custom_call.1} parent=35 // pred_region
          %s312 = sand.u32 %s22, 1
          %s313 = scalar_lea.sflag [#allocation4], %s312
          %s314 = sand.u32 %s44, 1
          %s315 = smul.addr %s314, 32
          %s316 = scalar_lea.vmem [#allocation3], %s315
          %s317 = smul.u32 8, %s29
          %s319 = ssub.s32 512, 512
          %320 = vsyncadd %s313, %s319
          %s321 = smul.addr %s317, 64
          %s322 = scalar_lea.hbm %s0, %s321
          %s323 = sshll.u32 %s316, 4
          %s324 = int_to_ptr.vmem [resolvable:$true] %s323
          %329 = dma.hbm_to_vmem [thread:$0]  %s322, 512, %s324, %s313, 64, 64, 4
        $region40: #{tpu_custom_call.1} parent=35 // pred_fallthru
          _
        // Predicated region
        $region41: #{tpu_custom_call.1} parent=35 // pred_check
          %p330 = pneg %p80
        $region42: #{tpu_custom_call.1} parent=35 // pred_check_branch
          %332 = sbr.rel (%p330) target = $region44
        $region43: #{tpu_custom_call.1} parent=35 // pred_region
          %p333 = scmp.lt.s32.totalorder %s29, 1
          %s334 = scalar_select %p333, %s29, 1
          %s335 = smul.addr %s334, 8
          %s336 = scalar_lea.vmem %s1, %s335
        $region44: #{tpu_custom_call.1} parent=35 // pred_fallthru
          _
        // Predicated region
        $region45: #{tpu_custom_call.1} parent=35 // pred_check
          %p337 = pneg %p211
        $region46: #{tpu_custom_call.1} parent=35 // pred_check_branch
          %339 = sbr.rel (%p337) target = $region48
        $region47: #{tpu_custom_call.1} parent=35 // pred_region
          %s340 = sand.u32 %s22, 1
          %s341 = scalar_lea.sflag [#allocation4], %s340
          %s342 = sand.u32 %s201, 1
          %s343 = smul.addr %s342, 128
          %s344 = scalar_lea.vmem [#allocation11], %s343
          %s345 = smul.u32 32, %s30
          %s347 = ssub.s32 2048, 2048
          %348 = vsyncadd %s341, %s347
          %s349 = smul.addr %s345, 64
          %s350 = scalar_lea.hbm %s7, %s349
          %s351 = sshll.u32 %s344, 4
          %s352 = int_to_ptr.vmem [resolvable:$true] %s351
          %357 = dma.hbm_to_vmem [thread:$0]  %s350, 2048, %s352, %s341, 64, 64, 4
        $region48: #{tpu_custom_call.1} parent=35 // pred_fallthru
          _
      $region36: #{tpu_custom_call.1} parent=5 // pred_fallthru
        _
      %p358 = scmp.le.s32.totalorder 1, %s22
      %p359 = scmp.lt.s32.totalorder %s22, 5
      %p360 = pnand %p358, %p359
      %p361 = pneg %p360
      // Predicated region
      $region49: #{tpu_custom_call.1} parent=5 // pred_check
        _
      $region50: #{tpu_custom_call.1} parent=5 // pred_check_branch
        %363 = sbr.rel (%p360) target = $region52
      $region51: #{tpu_custom_call.1} parent=5 // pred_region
        %s364 = ssub.s32 %s22, 1
        %s365 = sand.u32 %s27, 1
        %s366 = scalar_lea.sflag [#allocation4], %s365
        %s367 = sand.u32 %s47, 1
        %s368 = smul.addr %s367, 32
        %s369 = scalar_lea.vmem [#allocation3], %s368
        // Predicated region
        $region53: #{tpu_custom_call.1} parent=51 // pred_check
          %p370 = pneg %p60
        $region54: #{tpu_custom_call.1} parent=51 // pred_check_branch
          %372 = sbr.rel (%p370) target = $region56
        $region55: #{tpu_custom_call.1} parent=51 // pred_region
          %373 = dma.done %s366, 512
        $region56: #{tpu_custom_call.1} parent=51 // pred_fallthru
          _
        // Predicated region
        $region57: #{tpu_custom_call.1} parent=51 // pred_check
          %p374 = pneg %p107
        $region58: #{tpu_custom_call.1} parent=51 // pred_check_branch
          %376 = sbr.rel (%p374) target = $region60
        $region59: #{tpu_custom_call.1} parent=51 // pred_region
          %377 = dma.done [#allocation7], 1024
        $region60: #{tpu_custom_call.1} parent=51 // pred_fallthru
          _
        // Predicated region
        $region61: #{tpu_custom_call.1} parent=51 // pred_check
          %p378 = pneg %p128
        $region62: #{tpu_custom_call.1} parent=51 // pred_check_branch
          %380 = sbr.rel (%p378) target = $region64
        $region63: #{tpu_custom_call.1} parent=51 // pred_region
          %381 = dma.done [#allocation7], 1024
        $region64: #{tpu_custom_call.1} parent=51 // pred_fallthru
          _
        // Predicated region
        $region65: #{tpu_custom_call.1} parent=51 // pred_check
          %p382 = pneg %p170
        $region66: #{tpu_custom_call.1} parent=51 // pred_check_branch
          %384 = sbr.rel (%p382) target = $region68
        $region67: #{tpu_custom_call.1} parent=51 // pred_region
          %385 = dma.done [#allocation10], 2048
        $region68: #{tpu_custom_call.1} parent=51 // pred_fallthru
          _
        %s386 = sand.u32 %s27, 1
        %s387 = scalar_lea.sflag [#allocation4], %s386
        %s388 = sand.u32 %s204, 1
        %s389 = smul.addr %s388, 128
        %s390 = scalar_lea.vmem [#allocation11], %s389
        // Predicated region
        $region69: #{tpu_custom_call.1} parent=51 // pred_check
          %p391 = pneg %p217
        $region70: #{tpu_custom_call.1} parent=51 // pred_check_branch
          %393 = sbr.rel (%p391) target = $region72
        $region71: #{tpu_custom_call.1} parent=51 // pred_region
          %394 = dma.done %s387, 2048
        $region72: #{tpu_custom_call.1} parent=51 // pred_fallthru
          _
        %s395 = sand.u32 %s27, 1
        %s396 = scalar_lea.sflag [#allocation4], %s395
        %s397 = sand.u32 %s47, 1
        %s398 = smul.addr %s397, 32
        %s399 = scalar_lea.vmem [#allocation3], %s398
        %p400 = pneg %p60
        %p401 = pneg %p57
        %p402 = scmp.lt.s32.totalorder %s31, 1
        %s403 = scalar_select %p402, %s31, 1
        %s404 = smul.addr %s403, 8
        %s405 = scalar_lea.vmem %s1, %s404
        %p406 = pneg %p86
        %p407 = pneg %p83
        %p408 = pneg %p107
        %p409 = pneg %p104
        %p410 = pneg %p128
        %p411 = pneg %p125
        %p412 = pneg %p149
        %p413 = pneg %p146
        %p414 = pneg %p170
        %p415 = pneg %p167
        %p416 = pneg %p191
        %p417 = pneg %p188
        %s418 = sand.u32 %s27, 1
        %s419 = scalar_lea.sflag [#allocation4], %s418
        %s420 = sand.u32 %s204, 1
        %s421 = smul.addr %s420, 128
        %s422 = scalar_lea.vmem [#allocation11], %s421
        %p423 = pneg %p217
        %p424 = pneg %p214
        %p425 = pneg %p245
        %p426 = pneg %p242
        %s427 = sand.u32 %s232, 1
        %s428 = scalar_lea.sflag [#allocation5], %s427
        %s429 = sand.u32 %s232, 1
        %s430 = smul.addr %s429, 16
        %s431 = scalar_lea.vmem [#allocation12], %s430
        %s432 = smul.u32 8, %s31
        %p433 = scmp.lt.s32.totalorder %s31, 1
        %s434 = scalar_select %p433, %s31, 1
        %s435 = smul.addr %s434, 8
        %s436 = scalar_lea.vmem %s1, %s435
        %s437 = smul.u32 32, %s32
        %s438 = smul.u32 2, %s32
        %p440 = scmp.eq.s32.totalorder %s32, 0
        // Predicated region
        $region73: #{tpu_custom_call.1} parent=51 // pred_check
          %p441 = pneg %p440
        $region74: #{tpu_custom_call.1} parent=51 // pred_check_branch
          %443 = sbr.rel (%p441) target = $region76
        $region75: #{tpu_custom_call.1} parent=51 // pred_region
          %v444 = vld [vmem:[%s369] sm:$0xf]
          %v445 = vld [vmem:[%s369 + $0x4] sm:$0xf]
          %v446 = vld [vmem:[%s369 + $0x8] sm:$0xf]
          %v447 = vld [vmem:[%s369 + $0xc] sm:$0xf]
          %v448 = vld [vmem:[%s369 + $0x10] sm:$0xf]
          %v449 = vld [vmem:[%s369 + $0x14] sm:$0xf]
          %v450 = vld [vmem:[%s369 + $0x18] sm:$0xf]
          %v451 = vld [vmem:[%s369 + $0x1c] sm:$0xf]
          %v452 = vld [vmem:[#allocation6] sm:$0xf]
          %v453 = vld [vmem:[#allocation6 + $0x4] sm:$0xf]
          %v454 = vld [vmem:[#allocation6 + $0x8] sm:$0xf]
          %v455 = vld [vmem:[#allocation6 + $0xc] sm:$0xf]
          %v456 = vld [vmem:[#allocation6 + $0x10] sm:$0xf]
          %v457 = vld [vmem:[#allocation6 + $0x14] sm:$0xf]
          %v458 = vld [vmem:[#allocation6 + $0x18] sm:$0xf]
          %v459 = vld [vmem:[#allocation6 + $0x1c] sm:$0xf]
          %v460 = vld [vmem:[#allocation6 + $0x20] sm:$0xf]
          %v461 = vld [vmem:[#allocation6 + $0x24] sm:$0xf]
          %v462 = vld [vmem:[#allocation6 + $0x28] sm:$0xf]
          %v463 = vld [vmem:[#allocation6 + $0x2c] sm:$0xf]
          %v464 = vld [vmem:[#allocation6 + $0x30] sm:$0xf]
          %v465 = vld [vmem:[#allocation6 + $0x34] sm:$0xf]
          %v466 = vld [vmem:[#allocation6 + $0x38] sm:$0xf]
          %v467 = vld [vmem:[#allocation6 + $0x3c] sm:$0xf]
          %v476 = vunpack.c.l.b16 %v444
          %v477 = vunpack.c.l.b16 %v445
          %v478 = vunpack.c.l.b16 %v446
          %v479 = vunpack.c.l.b16 %v447
          %v480 = vunpack.c.l.b16 %v448
          %v481 = vunpack.c.l.b16 %v449
          %v482 = vunpack.c.l.b16 %v450
          %v483 = vunpack.c.l.b16 %v451
          %v484 = vpack.c.b16 %v477, %v476
          %v485 = vpack.c.b16 %v479, %v478
          %v486 = vpack.c.b16 %v481, %v480
          %v487 = vpack.c.b16 %v483, %v482
          %v508 = vunpack.c.l.b16 %v452
          %v509 = vunpack.c.l.b16 %v453
          %v510 = vunpack.c.l.b16 %v454
          %v511 = vunpack.c.l.b16 %v455
          %v512 = vunpack.c.l.b16 %v456
          %v513 = vunpack.c.l.b16 %v457
          %v514 = vunpack.c.l.b16 %v458
          %v515 = vunpack.c.l.b16 %v459
          %v516 = vunpack.c.l.b16 %v460
          %v517 = vunpack.c.l.b16 %v461
          %v518 = vunpack.c.l.b16 %v462
          %v519 = vunpack.c.l.b16 %v463
          %v520 = vunpack.c.l.b16 %v464
          %v521 = vunpack.c.l.b16 %v465
          %v522 = vunpack.c.l.b16 %v466
          %v523 = vunpack.c.l.b16 %v467
          %v524 = vpack.c.b16 %v509, %v508
          %v525 = vpack.c.b16 %v511, %v510
          %v526 = vpack.c.b16 %v513, %v512
          %v527 = vpack.c.b16 %v515, %v514
          %v528 = vpack.c.b16 %v517, %v516
          %v529 = vpack.c.b16 %v519, %v518
          %v530 = vpack.c.b16 %v521, %v520
          %v531 = vpack.c.b16 %v523, %v522
          %540 = vmatprep.subr.bf16.mxu0 0
          %541 = vmatpush1.bf16.msra.mxu0 %v531
          %542 = vmatprep.subr.bf16.mxu0 0
          %543 = vmatpush1.bf16.msra.mxu0 %v530
          %544 = vmatprep.subr.bf16.mxu0 0
          %545 = vmatpush1.bf16.msra.mxu0 %v529
          %546 = vmatprep.subr.bf16.mxu0 0
          %547 = vmatpush1.bf16.msra.mxu0 %v528
          %548 = vmatprep.subr.bf16.mxu0 0
          %549 = vmatpush1.bf16.msra.mxu0 %v527
          %550 = vmatprep.subr.bf16.mxu0 0
          %551 = vmatpush1.bf16.msra.mxu0 %v526
          %552 = vmatprep.subr.bf16.mxu0 0
          %553 = vmatpush1.bf16.msra.mxu0 %v525
          %554 = vmatprep.subr.bf16.mxu0 0
          %555 = vmatpush1.bf16.msra.mxu0 %v524
          %556 = vmatprep.subr.bf16.mxu0 0
          %557 = vmatpush2.bf16.msra.mxu0 0
          %558 = vmatprep.subr.bf16.mxu0 0
          %559 = vmatpush2.bf16.msra.mxu0 0
          %560 = vmatprep.subr.bf16.mxu0 0
          %561 = vmatpush2.bf16.msra.mxu0 0
          %562 = vmatprep.subr.bf16.mxu0 0
          %563 = vmatpush2.bf16.msra.mxu0 0
          %564 = vmatprep.subr.bf16.mxu0 0
          %565 = vmatpush2.bf16.msra.mxu0 0
          %566 = vmatprep.subr.bf16.mxu0 0
          %567 = vmatpush2.bf16.msra.mxu0 0
          %568 = vmatprep.subr.bf16.mxu0 0
          %569 = vmatpush2.bf16.msra.mxu0 0
          %570 = vmatprep.subr.bf16.mxu0 0
          %571 = vmatpush2.bf16.msra.mxu0 0
          %572 = vmatprep.mubr.bf16.mxu0 0
          %573 = vmatmul.mubr.bf16.gmra.mxu0 %v484
          %v574 = vpop.f32.mrf.mxu0
          %v575 = vadd.f32 0.0, %v574
          %v576 = vpop.f32.mrf.mxu0
          %v577 = vpop.f32.mrf.mxu0
          %v578 = vadd.f32 0.0, %v577
          %v579 = vpop.f32.mrf.mxu0
          %580 = vmatprep.mubr.bf16.mxu0 0
          %581 = vmatmul.mubr.bf16.gmra.mxu0 %v485
          %v582 = vpop.f32.mrf.mxu0
          %v583 = vadd.f32 0.0, %v582
          %v584 = vpop.f32.mrf.mxu0
          %v585 = vpop.f32.mrf.mxu0
          %v586 = vadd.f32 0.0, %v585
          %v587 = vpop.f32.mrf.mxu0
          %588 = vmatprep.mubr.bf16.mxu0 0
          %589 = vmatmul.mubr.bf16.gmra.mxu0 %v486
          %v590 = vpop.f32.mrf.mxu0
          %v591 = vadd.f32 0.0, %v590
          %v592 = vpop.f32.mrf.mxu0
          %v593 = vpop.f32.mrf.mxu0
          %v594 = vadd.f32 0.0, %v593
          %v595 = vpop.f32.mrf.mxu0
          %596 = vmatprep.mubr.bf16.mxu0 0
          %597 = vmatmul.mubr.bf16.gmra.mxu0 %v487
          %v598 = vpop.f32.mrf.mxu0
          %v599 = vadd.f32 0.0, %v598
          %v600 = vpop.f32.mrf.mxu0
          %v601 = vpop.f32.mrf.mxu0
          %v602 = vadd.f32 0.0, %v601
          %v603 = vpop.f32.mrf.mxu0
          %604 = vdwg.mxu0
          %v605 = vxor.u32 %v575, 2147483648
          %v606 = vxor.u32 %v578, 2147483648
          %v607 = vxor.u32 %v583, 2147483648
          %v608 = vxor.u32 %v586, 2147483648
          %v609 = vxor.u32 %v591, 2147483648
          %v610 = vxor.u32 %v594, 2147483648
          %v611 = vxor.u32 %v599, 2147483648
          %v612 = vxor.u32 %v602, 2147483648
          %v613 = vmul.f32 %v605, 1.442695
          %v614 = vpow.pop %v613
          %v615 = vmul.f32 %v606, 1.442695
          %v616 = vpow.pop %v615
          %v617 = vmul.f32 %v607, 1.442695
          %v618 = vpow.pop %v617
          %v619 = vmul.f32 %v608, 1.442695
          %v620 = vpow.pop %v619
          %v621 = vmul.f32 %v609, 1.442695
          %v622 = vpow.pop %v621
          %v623 = vmul.f32 %v610, 1.442695
          %v624 = vpow.pop %v623
          %v625 = vmul.f32 %v611, 1.442695
          %v626 = vpow.pop %v625
          %v627 = vmul.f32 %v612, 1.442695
          %v628 = vpow.pop %v627
          %v629 = vadd.f32 %v614, 1.0
          %v630 = vadd.f32 %v616, 1.0
          %v631 = vadd.f32 %v618, 1.0
          %v632 = vadd.f32 %v620, 1.0
          %v633 = vadd.f32 %v622, 1.0
          %v634 = vadd.f32 %v624, 1.0
          %v635 = vadd.f32 %v626, 1.0
          %v636 = vadd.f32 %v628, 1.0
          %v637 = vrcp.pop %v629
          %v638 = vmul.f32 1.0, %v637
          %v639 = vrcp.pop %v630
          %v640 = vmul.f32 1.0, %v639
          %v641 = vrcp.pop %v631
          %v642 = vmul.f32 1.0, %v641
          %v643 = vrcp.pop %v632
          %v644 = vmul.f32 1.0, %v643
          %v645 = vrcp.pop %v633
          %v646 = vmul.f32 1.0, %v645
          %v647 = vrcp.pop %v634
          %v648 = vmul.f32 1.0, %v647
          %v649 = vrcp.pop %v635
          %v650 = vmul.f32 1.0, %v649
          %v651 = vrcp.pop %v636
          %v652 = vmul.f32 1.0, %v651
          %v653 = vld [vmem:[#allocation8] sm:$0xf]
          %v654 = vld [vmem:[#allocation8 + $0x4] sm:$0xf]
          %v655 = vld [vmem:[#allocation8 + $0x8] sm:$0xf]
          %v656 = vld [vmem:[#allocation8 + $0xc] sm:$0xf]
          %v657 = vld [vmem:[#allocation8 + $0x10] sm:$0xf]
          %v658 = vld [vmem:[#allocation8 + $0x14] sm:$0xf]
          %v659 = vld [vmem:[#allocation8 + $0x18] sm:$0xf]
          %v660 = vld [vmem:[#allocation8 + $0x1c] sm:$0xf]
          %v661 = vld [vmem:[#allocation8 + $0x20] sm:$0xf]
          %v662 = vld [vmem:[#allocation8 + $0x24] sm:$0xf]
          %v663 = vld [vmem:[#allocation8 + $0x28] sm:$0xf]
          %v664 = vld [vmem:[#allocation8 + $0x2c] sm:$0xf]
          %v665 = vld [vmem:[#allocation8 + $0x30] sm:$0xf]
          %v666 = vld [vmem:[#allocation8 + $0x34] sm:$0xf]
          %v667 = vld [vmem:[#allocation8 + $0x38] sm:$0xf]
          %v668 = vld [vmem:[#allocation8 + $0x3c] sm:$0xf]
          %v669 = vld [vmem:[%s4] sm:$0x1]
          %v671 = vlaneseq
          %v672 = vshrl.u32 %v671, 7
          %v673 = vsub.s32 0, %v672
          %v674 = vrot.slane %v669, %v673
          %v692 = vunpack.c.l.b16 %v653
          %v693 = vunpack.c.l.b16 %v654
          %v694 = vunpack.c.l.b16 %v655
          %v695 = vunpack.c.l.b16 %v656
          %v696 = vunpack.c.l.b16 %v657
          %v697 = vunpack.c.l.b16 %v658
          %v698 = vunpack.c.l.b16 %v659
          %v699 = vunpack.c.l.b16 %v660
          %v700 = vunpack.c.l.b16 %v661
          %v701 = vunpack.c.l.b16 %v662
          %v702 = vunpack.c.l.b16 %v663
          %v703 = vunpack.c.l.b16 %v664
          %v704 = vunpack.c.l.b16 %v665
          %v705 = vunpack.c.l.b16 %v666
          %v706 = vunpack.c.l.b16 %v667
          %v707 = vunpack.c.l.b16 %v668
          %v708 = vpack.c.b16 %v693, %v692
          %v709 = vpack.c.b16 %v695, %v694
          %v710 = vpack.c.b16 %v697, %v696
          %v711 = vpack.c.b16 %v699, %v698
          %v712 = vpack.c.b16 %v701, %v700
          %v713 = vpack.c.b16 %v703, %v702
          %v714 = vpack.c.b16 %v705, %v704
          %v715 = vpack.c.b16 %v707, %v706
          %724 = vmatprep.subr.bf16.mxu0 0
          %725 = vmatpush1.bf16.msra.mxu0 %v715
          %726 = vmatprep.subr.bf16.mxu0 0
          %727 = vmatpush1.bf16.msra.mxu0 %v714
          %728 = vmatprep.subr.bf16.mxu0 0
          %729 = vmatpush1.bf16.msra.mxu0 %v713
          %730 = vmatprep.subr.bf16.mxu0 0
          %731 = vmatpush1.bf16.msra.mxu0 %v712
          %732 = vmatprep.subr.bf16.mxu0 0
          %733 = vmatpush1.bf16.msra.mxu0 %v711
          %734 = vmatprep.subr.bf16.mxu0 0
          %735 = vmatpush1.bf16.msra.mxu0 %v710
          %736 = vmatprep.subr.bf16.mxu0 0
          %737 = vmatpush1.bf16.msra.mxu0 %v709
          %738 = vmatprep.subr.bf16.mxu0 0
          %739 = vmatpush1.bf16.msra.mxu0 %v708
          %740 = vmatprep.subr.bf16.mxu0 0
          %741 = vmatpush2.bf16.msra.mxu0 0
          %742 = vmatprep.subr.bf16.mxu0 0
          %743 = vmatpush2.bf16.msra.mxu0 0
          %744 = vmatprep.subr.bf16.mxu0 0
          %745 = vmatpush2.bf16.msra.mxu0 0
          %746 = vmatprep.subr.bf16.mxu0 0
          %747 = vmatpush2.bf16.msra.mxu0 0
          %748 = vmatprep.subr.bf16.mxu0 0
          %749 = vmatpush2.bf16.msra.mxu0 0
          %750 = vmatprep.subr.bf16.mxu0 0
          %751 = vmatpush2.bf16.msra.mxu0 0
          %752 = vmatprep.subr.bf16.mxu0 0
          %753 = vmatpush2.bf16.msra.mxu0 0
          %754 = vmatprep.subr.bf16.mxu0 0
          %755 = vmatpush2.bf16.msra.mxu0 0
          %756 = vmatprep.mubr.bf16.mxu0 0
          %757 = vmatmul.mubr.bf16.gmra.mxu0 %v484
          %v758 = vpop.f32.mrf.mxu0
          %v759 = vadd.f32 %v674, %v758
          %v760 = vpop.f32.mrf.mxu0
          %v761 = vpop.f32.mrf.mxu0
          %v762 = vadd.f32 %v674, %v761
          %v763 = vpop.f32.mrf.mxu0
          %764 = vmatprep.mubr.bf16.mxu0 0
          %765 = vmatmul.mubr.bf16.gmra.mxu0 %v485
          %v766 = vpop.f32.mrf.mxu0
          %v767 = vadd.f32 %v674, %v766
          %v768 = vpop.f32.mrf.mxu0
          %v769 = vpop.f32.mrf.mxu0
          %v770 = vadd.f32 %v674, %v769
          %v771 = vpop.f32.mrf.mxu0
          %772 = vmatprep.mubr.bf16.mxu0 0
          %773 = vmatmul.mubr.bf16.gmra.mxu0 %v486
          %v774 = vpop.f32.mrf.mxu0
          %v775 = vadd.f32 %v674, %v774
          %v776 = vpop.f32.mrf.mxu0
          %v777 = vpop.f32.mrf.mxu0
          %v778 = vadd.f32 %v674, %v777
          %v779 = vpop.f32.mrf.mxu0
          %780 = vmatprep.mubr.bf16.mxu0 0
          %781 = vmatmul.mubr.bf16.gmra.mxu0 %v487
          %v782 = vpop.f32.mrf.mxu0
          %v783 = vadd.f32 %v674, %v782
          %v784 = vpop.f32.mrf.mxu0
          %v785 = vpop.f32.mrf.mxu0
          %v786 = vadd.f32 %v674, %v785
          %v787 = vpop.f32.mrf.mxu0
          %788 = vdwg.mxu0
          %v789 = vxor.u32 %v759, 2147483648
          %v790 = vxor.u32 %v762, 2147483648
          %v791 = vxor.u32 %v767, 2147483648
          %v792 = vxor.u32 %v770, 2147483648
          %v793 = vxor.u32 %v775, 2147483648
          %v794 = vxor.u32 %v778, 2147483648
          %v795 = vxor.u32 %v783, 2147483648
          %v796 = vxor.u32 %v786, 2147483648
          %v797 = vmul.f32 %v789, 1.442695
          %v798 = vpow.pop %v797
          %v799 = vmul.f32 %v790, 1.442695
          %v800 = vpow.pop %v799
          %v801 = vmul.f32 %v791, 1.442695
          %v802 = vpow.pop %v801
          %v803 = vmul.f32 %v792, 1.442695
          %v804 = vpow.pop %v803
          %v805 = vmul.f32 %v793, 1.442695
          %v806 = vpow.pop %v805
          %v807 = vmul.f32 %v794, 1.442695
          %v808 = vpow.pop %v807
          %v809 = vmul.f32 %v795, 1.442695
          %v810 = vpow.pop %v809
          %v811 = vmul.f32 %v796, 1.442695
          %v812 = vpow.pop %v811
          %v813 = vadd.f32 %v798, 1.0
          %v814 = vadd.f32 %v800, 1.0
          %v815 = vadd.f32 %v802, 1.0
          %v816 = vadd.f32 %v804, 1.0
          %v817 = vadd.f32 %v806, 1.0
          %v818 = vadd.f32 %v808, 1.0
          %v819 = vadd.f32 %v810, 1.0
          %v820 = vadd.f32 %v812, 1.0
          %v821 = vrcp.pop %v813
          %v822 = vmul.f32 1.0, %v821
          %v823 = vrcp.pop %v814
          %v824 = vmul.f32 1.0, %v823
          %v825 = vrcp.pop %v815
          %v826 = vmul.f32 1.0, %v825
          %v827 = vrcp.pop %v816
          %v828 = vmul.f32 1.0, %v827
          %v829 = vrcp.pop %v817
          %v830 = vmul.f32 1.0, %v829
          %v831 = vrcp.pop %v818
          %v832 = vmul.f32 1.0, %v831
          %v833 = vrcp.pop %v819
          %v834 = vmul.f32 1.0, %v833
          %v835 = vrcp.pop %v820
          %v836 = vmul.f32 1.0, %v835
          %v837 = vpack.c.bf16 %v638, %v638
          %v838 = vpack.c.bf16 %v640, %v640
          %v839 = vpack.c.bf16 %v642, %v642
          %v840 = vpack.c.bf16 %v644, %v644
          %v841 = vpack.c.bf16 %v646, %v646
          %v842 = vpack.c.bf16 %v648, %v648
          %v843 = vpack.c.bf16 %v650, %v650
          %v844 = vpack.c.bf16 %v652, %v652
          %v845 = vpack.c.bf16 %v822, %v822
          %v846 = vpack.c.bf16 %v824, %v824
          %v847 = vpack.c.bf16 %v826, %v826
          %v848 = vpack.c.bf16 %v828, %v828
          %v849 = vpack.c.bf16 %v830, %v830
          %v850 = vpack.c.bf16 %v832, %v832
          %v851 = vpack.c.bf16 %v834, %v834
          %v852 = vpack.c.bf16 %v836, %v836
          %853 = vmatprep.subr.bf16.mxu0 0
          %854 = vmatpush1.bf16.xpose.msra.mxu0 0
          %855 = vmatprep.subr.bf16.mxu0 0
          %856 = vmatpush1.bf16.xpose.msra.mxu0 0
          %857 = vmatprep.subr.bf16.mxu0 0
          %858 = vmatpush1.bf16.xpose.msra.mxu0 0
          %859 = vmatprep.subr.bf16.mxu0 0
          %860 = vmatpush1.bf16.xpose.msra.mxu0 0
          %861 = vmatprep.subr.bf16.mxu0 0
          %862 = vmatpush1.bf16.xpose.msra.mxu0 0
          %863 = vmatprep.subr.bf16.mxu0 0
          %864 = vmatpush1.bf16.xpose.msra.mxu0 0
          %865 = vmatprep.subr.bf16.mxu0 0
          %866 = vmatpush1.bf16.xpose.msra.mxu0 0
          %867 = vmatprep.subr.bf16.mxu0 0
          %868 = vmatpush1.bf16.xpose.msra.mxu0 %v845
          %869 = vmatprep.subr.bf16.mxu0 0
          %870 = vmatpush2.bf16.xpose.msra.mxu0 0
          %871 = vmatprep.subr.bf16.mxu0 0
          %872 = vmatpush2.bf16.xpose.msra.mxu0 0
          %873 = vmatprep.subr.bf16.mxu0 0
          %874 = vmatpush2.bf16.xpose.msra.mxu0 0
          %875 = vmatprep.subr.bf16.mxu0 0
          %876 = vmatpush2.bf16.xpose.msra.mxu0 0
          %877 = vmatprep.subr.bf16.mxu0 0
          %878 = vmatpush2.bf16.xpose.msra.mxu0 0
          %879 = vmatprep.subr.bf16.mxu0 0
          %880 = vmatpush2.bf16.xpose.msra.mxu0 0
          %881 = vmatprep.subr.bf16.mxu0 0
          %882 = vmatpush2.bf16.xpose.msra.mxu0 0
          %883 = vmatprep.subr.bf16.mxu0 0
          %884 = vmatpush2.bf16.xpose.msra.mxu0 0
          %885 = vmatprep.mubr.bf16.mxu0 0
          %886 = vmatmul.mubr.bf16.gmra.mxu0 %v837
          %v887 = vpop.f32.mrf.mxu0
          %v888 = vadd.f32 0.0, %v887
          %v889 = vpop.f32.mrf.mxu0
          %v890 = vpop.f32.mrf.mxu0
          %v891 = vpop.f32.mrf.mxu0
          %892 = vdwg.mxu0
          %893 = vmatprep.subr.bf16.mxu0 0
          %894 = vmatpush1.bf16.xpose.msra.mxu0 0
          %895 = vmatprep.subr.bf16.mxu0 0
          %896 = vmatpush1.bf16.xpose.msra.mxu0 0
          %897 = vmatprep.subr.bf16.mxu0 0
          %898 = vmatpush1.bf16.xpose.msra.mxu0 0
          %899 = vmatprep.subr.bf16.mxu0 0
          %900 = vmatpush1.bf16.xpose.msra.mxu0 0
          %901 = vmatprep.subr.bf16.mxu0 0
          %902 = vmatpush1.bf16.xpose.msra.mxu0 0
          %903 = vmatprep.subr.bf16.mxu0 0
          %904 = vmatpush1.bf16.xpose.msra.mxu0 0
          %905 = vmatprep.subr.bf16.mxu0 0
          %906 = vmatpush1.bf16.xpose.msra.mxu0 0
          %907 = vmatprep.subr.bf16.mxu0 0
          %908 = vmatpush1.bf16.xpose.msra.mxu0 %v846
          %909 = vmatprep.subr.bf16.mxu0 0
          %910 = vmatpush2.bf16.xpose.msra.mxu0 0
          %911 = vmatprep.subr.bf16.mxu0 0
          %912 = vmatpush2.bf16.xpose.msra.mxu0 0
          %913 = vmatprep.subr.bf16.mxu0 0
          %914 = vmatpush2.bf16.xpose.msra.mxu0 0
          %915 = vmatprep.subr.bf16.mxu0 0
          %916 = vmatpush2.bf16.xpose.msra.mxu0 0
          %917 = vmatprep.subr.bf16.mxu0 0
          %918 = vmatpush2.bf16.xpose.msra.mxu0 0
          %919 = vmatprep.subr.bf16.mxu0 0
          %920 = vmatpush2.bf16.xpose.msra.mxu0 0
          %921 = vmatprep.subr.bf16.mxu0 0
          %922 = vmatpush2.bf16.xpose.msra.mxu0 0
          %923 = vmatprep.subr.bf16.mxu0 0
          %924 = vmatpush2.bf16.xpose.msra.mxu0 0
          %925 = vmatprep.mubr.bf16.mxu0 0
          %926 = vmatmul.mubr.bf16.gmra.mxu0 %v838
          %v927 = vpop.f32.mrf.mxu0
          %v928 = vadd.f32 0.0, %v927
          %v929 = vpop.f32.mrf.mxu0
          %v930 = vpop.f32.mrf.mxu0
          %v931 = vpop.f32.mrf.mxu0
          %932 = vdwg.mxu0
          %933 = vmatprep.subr.bf16.mxu0 0
          %934 = vmatpush1.bf16.xpose.msra.mxu0 0
          %935 = vmatprep.subr.bf16.mxu0 0
          %936 = vmatpush1.bf16.xpose.msra.mxu0 0
          %937 = vmatprep.subr.bf16.mxu0 0
          %938 = vmatpush1.bf16.xpose.msra.mxu0 0
          %939 = vmatprep.subr.bf16.mxu0 0
          %940 = vmatpush1.bf16.xpose.msra.mxu0 0
          %941 = vmatprep.subr.bf16.mxu0 0
          %942 = vmatpush1.bf16.xpose.msra.mxu0 0
          %943 = vmatprep.subr.bf16.mxu0 0
          %944 = vmatpush1.bf16.xpose.msra.mxu0 0
          %945 = vmatprep.subr.bf16.mxu0 0
          %946 = vmatpush1.bf16.xpose.msra.mxu0 0
          %947 = vmatprep.subr.bf16.mxu0 0
          %948 = vmatpush1.bf16.xpose.msra.mxu0 %v847
          %949 = vmatprep.subr.bf16.mxu0 0
          %950 = vmatpush2.bf16.xpose.msra.mxu0 0
          %951 = vmatprep.subr.bf16.mxu0 0
          %952 = vmatpush2.bf16.xpose.msra.mxu0 0
          %953 = vmatprep.subr.bf16.mxu0 0
          %954 = vmatpush2.bf16.xpose.msra.mxu0 0
          %955 = vmatprep.subr.bf16.mxu0 0
          %956 = vmatpush2.bf16.xpose.msra.mxu0 0
          %957 = vmatprep.subr.bf16.mxu0 0
          %958 = vmatpush2.bf16.xpose.msra.mxu0 0
          %959 = vmatprep.subr.bf16.mxu0 0
          %960 = vmatpush2.bf16.xpose.msra.mxu0 0
          %961 = vmatprep.subr.bf16.mxu0 0
          %962 = vmatpush2.bf16.xpose.msra.mxu0 0
          %963 = vmatprep.subr.bf16.mxu0 0
          %964 = vmatpush2.bf16.xpose.msra.mxu0 0
          %965 = vmatprep.mubr.bf16.mxu0 0
          %966 = vmatmul.mubr.bf16.gmra.mxu0 %v839
          %v967 = vpop.f32.mrf.mxu0
          %v968 = vadd.f32 0.0, %v967
          %v969 = vpop.f32.mrf.mxu0
          %v970 = vpop.f32.mrf.mxu0
          %v971 = vpop.f32.mrf.mxu0
          %972 = vdwg.mxu0
          %973 = vmatprep.subr.bf16.mxu0 0
          %974 = vmatpush1.bf16.xpose.msra.mxu0 0
          %975 = vmatprep.subr.bf16.mxu0 0
          %976 = vmatpush1.bf16.xpose.msra.mxu0 0
          %977 = vmatprep.subr.bf16.mxu0 0
          %978 = vmatpush1.bf16.xpose.msra.mxu0 0
          %979 = vmatprep.subr.bf16.mxu0 0
          %980 = vmatpush1.bf16.xpose.msra.mxu0 0
          %981 = vmatprep.subr.bf16.mxu0 0
          %982 = vmatpush1.bf16.xpose.msra.mxu0 0
          %983 = vmatprep.subr.bf16.mxu0 0
          %984 = vmatpush1.bf16.xpose.msra.mxu0 0
          %985 = vmatprep.subr.bf16.mxu0 0
          %986 = vmatpush1.bf16.xpose.msra.mxu0 0
          %987 = vmatprep.subr.bf16.mxu0 0
          %988 = vmatpush1.bf16.xpose.msra.mxu0 %v848
          %989 = vmatprep.subr.bf16.mxu0 0
          %990 = vmatpush2.bf16.xpose.msra.mxu0 0
          %991 = vmatprep.subr.bf16.mxu0 0
          %992 = vmatpush2.bf16.xpose.msra.mxu0 0
          %993 = vmatprep.subr.bf16.mxu0 0
          %994 = vmatpush2.bf16.xpose.msra.mxu0 0
          %995 = vmatprep.subr.bf16.mxu0 0
          %996 = vmatpush2.bf16.xpose.msra.mxu0 0
          %997 = vmatprep.subr.bf16.mxu0 0
          %998 = vmatpush2.bf16.xpose.msra.mxu0 0
          %999 = vmatprep.subr.bf16.mxu0 0
          %1000 = vmatpush2.bf16.xpose.msra.mxu0 0
          %1001 = vmatprep.subr.bf16.mxu0 0
          %1002 = vmatpush2.bf16.xpose.msra.mxu0 0
          %1003 = vmatprep.subr.bf16.mxu0 0
          %1004 = vmatpush2.bf16.xpose.msra.mxu0 0
          %1005 = vmatprep.mubr.bf16.mxu0 0
          %1006 = vmatmul.mubr.bf16.gmra.mxu0 %v840
          %v1007 = vpop.f32.mrf.mxu0
          %v1008 = vadd.f32 0.0, %v1007
          %v1009 = vpop.f32.mrf.mxu0
          %v1010 = vpop.f32.mrf.mxu0
          %v1011 = vpop.f32.mrf.mxu0
          %1012 = vdwg.mxu0
          %1013 = vmatprep.subr.bf16.mxu0 0
          %1014 = vmatpush1.bf16.xpose.msra.mxu0 0
          %1015 = vmatprep.subr.bf16.mxu0 0
          %1016 = vmatpush1.bf16.xpose.msra.mxu0 0
          %1017 = vmatprep.subr.bf16.mxu0 0
          %1018 = vmatpush1.bf16.xpose.msra.mxu0 0
          %1019 = vmatprep.subr.bf16.mxu0 0
          %1020 = vmatpush1.bf16.xpose.msra.mxu0 0
          %1021 = vmatprep.subr.bf16.mxu0 0
          %1022 = vmatpush1.bf16.xpose.msra.mxu0 0
          %1023 = vmatprep.subr.bf16.mxu0 0
          %1024 = vmatpush1.bf16.xpose.msra.mxu0 0
          %1025 = vmatprep.subr.bf16.mxu0 0
          %1026 = vmatpush1.bf16.xpose.msra.mxu0 0
          %1027 = vmatprep.subr.bf16.mxu0 0
          %1028 = vmatpush1.bf16.xpose.msra.mxu0 %v849
          %1029 = vmatprep.subr.bf16.mxu0 0
          %1030 = vmatpush2.bf16.xpose.msra.mxu0 0
          %1031 = vmatprep.subr.bf16.mxu0 0
          %1032 = vmatpush2.bf16.xpose.msra.mxu0 0
          %1033 = vmatprep.subr.bf16.mxu0 0
          %1034 = vmatpush2.bf16.xpose.msra.mxu0 0
          %1035 = vmatprep.subr.bf16.mxu0 0
          %1036 = vmatpush2.bf16.xpose.msra.mxu0 0
          %1037 = vmatprep.subr.bf16.mxu0 0
          %1038 = vmatpush2.bf16.xpose.msra.mxu0 0
          %1039 = vmatprep.subr.bf16.mxu0 0
          %1040 = vmatpush2.bf16.xpose.msra.mxu0 0
          %1041 = vmatprep.subr.bf16.mxu0 0
          %1042 = vmatpush2.bf16.xpose.msra.mxu0 0
          %1043 = vmatprep.subr.bf16.mxu0 0
          %1044 = vmatpush2.bf16.xpose.msra.mxu0 0
          %1045 = vmatprep.mubr.bf16.mxu0 0
          %1046 = vmatmul.mubr.bf16.gmra.mxu0 %v841
          %v1047 = vpop.f32.mrf.mxu0
          %v1048 = vadd.f32 0.0, %v1047
          %v1049 = vpop.f32.mrf.mxu0
          %v1050 = vpop.f32.mrf.mxu0
          %v1051 = vpop.f32.mrf.mxu0
          %1052 = vdwg.mxu0
          %1053 = vmatprep.subr.bf16.mxu0 0
          %1054 = vmatpush1.bf16.xpose.msra.mxu0 0
          %1055 = vmatprep.subr.bf16.mxu0 0
          %1056 = vmatpush1.bf16.xpose.msra.mxu0 0
          %1057 = vmatprep.subr.bf16.mxu0 0
          %1058 = vmatpush1.bf16.xpose.msra.mxu0 0
          %1059 = vmatprep.subr.bf16.mxu0 0
          %1060 = vmatpush1.bf16.xpose.msra.mxu0 0
          %1061 = vmatprep.subr.bf16.mxu0 0
          %1062 = vmatpush1.bf16.xpose.msra.mxu0 0
          %1063 = vmatprep.subr.bf16.mxu0 0
          %1064 = vmatpush1.bf16.xpose.msra.mxu0 0
          %1065 = vmatprep.subr.bf16.mxu0 0
          %1066 = vmatpush1.bf16.xpose.msra.mxu0 0
          %1067 = vmatprep.subr.bf16.mxu0 0
          %1068 = vmatpush1.bf16.xpose.msra.mxu0 %v850
          %1069 = vmatprep.subr.bf16.mxu0 0
          %1070 = vmatpush2.bf16.xpose.msra.mxu0 0
          %1071 = vmatprep.subr.bf16.mxu0 0
          %1072 = vmatpush2.bf16.xpose.msra.mxu0 0
          %1073 = vmatprep.subr.bf16.mxu0 0
          %1074 = vmatpush2.bf16.xpose.msra.mxu0 0
          %1075 = vmatprep.subr.bf16.mxu0 0
          %1076 = vmatpush2.bf16.xpose.msra.mxu0 0
          %1077 = vmatprep.subr.bf16.mxu0 0
          %1078 = vmatpush2.bf16.xpose.msra.mxu0 0
          %1079 = vmatprep.subr.bf16.mxu0 0
          %1080 = vmatpush2.bf16.xpose.msra.mxu0 0
          %1081 = vmatprep.subr.bf16.mxu0 0
          %1082 = vmatpush2.bf16.xpose.msra.mxu0 0
          %1083 = vmatprep.subr.bf16.mxu0 0
          %1084 = vmatpush2.bf16.xpose.msra.mxu0 0
          %1085 = vmatprep.mubr.bf16.mxu0 0
          %1086 = vmatmul.mubr.bf16.gmra.mxu0 %v842
          %v1087 = vpop.f32.mrf.mxu0
          %v1088 = vadd.f32 0.0, %v1087
          %v1089 = vpop.f32.mrf.mxu0
          %v1090 = vpop.f32.mrf.mxu0
          %v1091 = vpop.f32.mrf.mxu0
          %1092 = vdwg.mxu0
          %1093 = vmatprep.subr.bf16.mxu0 0
          %1094 = vmatpush1.bf16.xpose.msra.mxu0 0
          %1095 = vmatprep.subr.bf16.mxu0 0
          %1096 = vmatpush1.bf16.xpose.msra.mxu0 0
          %1097 = vmatprep.subr.bf16.mxu0 0
          %1098 = vmatpush1.bf16.xpose.msra.mxu0 0
          %1099 = vmatprep.subr.bf16.mxu0 0
          %1100 = vmatpush1.bf16.xpose.msra.mxu0 0
          %1101 = vmatprep.subr.bf16.mxu0 0
          %1102 = vmatpush1.bf16.xpose.msra.mxu0 0
          %1103 = vmatprep.subr.bf16.mxu0 0
          %1104 = vmatpush1.bf16.xpose.msra.mxu0 0
          %1105 = vmatprep.subr.bf16.mxu0 0
          %1106 = vmatpush1.bf16.xpose.msra.mxu0 0
          %1107 = vmatprep.subr.bf16.mxu0 0
          %1108 = vmatpush1.bf16.xpose.msra.mxu0 %v851
          %1109 = vmatprep.subr.bf16.mxu0 0
          %1110 = vmatpush2.bf16.xpose.msra.mxu0 0
          %1111 = vmatprep.subr.bf16.mxu0 0
          %1112 = vmatpush2.bf16.xpose.msra.mxu0 0
          %1113 = vmatprep.subr.bf16.mxu0 0
          %1114 = vmatpush2.bf16.xpose.msra.mxu0 0
          %1115 = vmatprep.subr.bf16.mxu0 0
          %1116 = vmatpush2.bf16.xpose.msra.mxu0 0
          %1117 = vmatprep.subr.bf16.mxu0 0
          %1118 = vmatpush2.bf16.xpose.msra.mxu0 0
          %1119 = vmatprep.subr.bf16.mxu0 0
          %1120 = vmatpush2.bf16.xpose.msra.mxu0 0
          %1121 = vmatprep.subr.bf16.mxu0 0
          %1122 = vmatpush2.bf16.xpose.msra.mxu0 0
          %1123 = vmatprep.subr.bf16.mxu0 0
          %1124 = vmatpush2.bf16.xpose.msra.mxu0 0
          %1125 = vmatprep.mubr.bf16.mxu0 0
          %1126 = vmatmul.mubr.bf16.gmra.mxu0 %v843
          %v1127 = vpop.f32.mrf.mxu0
          %v1128 = vadd.f32 0.0, %v1127
          %v1129 = vpop.f32.mrf.mxu0
          %v1130 = vpop.f32.mrf.mxu0
          %v1131 = vpop.f32.mrf.mxu0
          %1132 = vdwg.mxu0
          %1133 = vmatprep.subr.bf16.mxu0 0
          %1134 = vmatpush1.bf16.xpose.msra.mxu0 0
          %1135 = vmatprep.subr.bf16.mxu0 0
          %1136 = vmatpush1.bf16.xpose.msra.mxu0 0
          %1137 = vmatprep.subr.bf16.mxu0 0
          %1138 = vmatpush1.bf16.xpose.msra.mxu0 0
          %1139 = vmatprep.subr.bf16.mxu0 0
          %1140 = vmatpush1.bf16.xpose.msra.mxu0 0
          %1141 = vmatprep.subr.bf16.mxu0 0
          %1142 = vmatpush1.bf16.xpose.msra.mxu0 0
          %1143 = vmatprep.subr.bf16.mxu0 0
          %1144 = vmatpush1.bf16.xpose.msra.mxu0 0
          %1145 = vmatprep.subr.bf16.mxu0 0
          %1146 = vmatpush1.bf16.xpose.msra.mxu0 0
          %1147 = vmatprep.subr.bf16.mxu0 0
          %1148 = vmatpush1.bf16.xpose.msra.mxu0 %v852
          %1149 = vmatprep.subr.bf16.mxu0 0
          %1150 = vmatpush2.bf16.xpose.msra.mxu0 0
          %1151 = vmatprep.subr.bf16.mxu0 0
          %1152 = vmatpush2.bf16.xpose.msra.mxu0 0
          %1153 = vmatprep.subr.bf16.mxu0 0
          %1154 = vmatpush2.bf16.xpose.msra.mxu0 0
          %1155 = vmatprep.subr.bf16.mxu0 0
          %1156 = vmatpush2.bf16.xpose.msra.mxu0 0
          %1157 = vmatprep.subr.bf16.mxu0 0
          %1158 = vmatpush2.bf16.xpose.msra.mxu0 0
          %1159 = vmatprep.subr.bf16.mxu0 0
          %1160 = vmatpush2.bf16.xpose.msra.mxu0 0
          %1161 = vmatprep.subr.bf16.mxu0 0
          %1162 = vmatpush2.bf16.xpose.msra.mxu0 0
          %1163 = vmatprep.subr.bf16.mxu0 0
          %1164 = vmatpush2.bf16.xpose.msra.mxu0 0
          %1165 = vmatprep.mubr.bf16.mxu0 0
          %1166 = vmatmul.mubr.bf16.gmra.mxu0 %v844
          %v1167 = vpop.f32.mrf.mxu0
          %v1168 = vadd.f32 0.0, %v1167
          %v1169 = vpop.f32.mrf.mxu0
          %v1170 = vpop.f32.mrf.mxu0
          %v1171 = vpop.f32.mrf.mxu0
          %1172 = vdwg.mxu0
          %v1173 = vxor.u32 %v888, 2147483648
          %v1174 = vxor.u32 %v928, 2147483648
          %v1175 = vxor.u32 %v968, 2147483648
          %v1176 = vxor.u32 %v1008, 2147483648
          %v1177 = vxor.u32 %v1048, 2147483648
          %v1178 = vxor.u32 %v1088, 2147483648
          %v1179 = vxor.u32 %v1128, 2147483648
          %v1180 = vxor.u32 %v1168, 2147483648
          %v1181 = vmul.f32 %v1173, 1.442695
          %v1182 = vpow.pop %v1181
          %v1183 = vmul.f32 %v1174, 1.442695
          %v1184 = vpow.pop %v1183
          %v1185 = vmul.f32 %v1175, 1.442695
          %v1186 = vpow.pop %v1185
          %v1187 = vmul.f32 %v1176, 1.442695
          %v1188 = vpow.pop %v1187
          %v1189 = vmul.f32 %v1177, 1.442695
          %v1190 = vpow.pop %v1189
          %v1191 = vmul.f32 %v1178, 1.442695
          %v1192 = vpow.pop %v1191
          %v1193 = vmul.f32 %v1179, 1.442695
          %v1194 = vpow.pop %v1193
          %v1195 = vmul.f32 %v1180, 1.442695
          %v1196 = vpow.pop %v1195
          %v1197 = vadd.f32 %v1182, 1.0
          %v1198 = vadd.f32 %v1184, 1.0
          %v1199 = vadd.f32 %v1186, 1.0
          %v1200 = vadd.f32 %v1188, 1.0
          %v1201 = vadd.f32 %v1190, 1.0
          %v1202 = vadd.f32 %v1192, 1.0
          %v1203 = vadd.f32 %v1194, 1.0
          %v1204 = vadd.f32 %v1196, 1.0
          %v1205 = vrcp.pop %v1197
          %v1206 = vmul.f32 1.0, %v1205
          %v1207 = vrcp.pop %v1198
          %v1208 = vmul.f32 1.0, %v1207
          %v1209 = vrcp.pop %v1199
          %v1210 = vmul.f32 1.0, %v1209
          %v1211 = vrcp.pop %v1200
          %v1212 = vmul.f32 1.0, %v1211
          %v1213 = vrcp.pop %v1201
          %v1214 = vmul.f32 1.0, %v1213
          %v1215 = vrcp.pop %v1202
          %v1216 = vmul.f32 1.0, %v1215
          %v1217 = vrcp.pop %v1203
          %v1218 = vmul.f32 1.0, %v1217
          %v1219 = vrcp.pop %v1204
          %v1220 = vmul.f32 1.0, %v1219
          %v1221 = vmul.f32 %v1206, 0.088388346
          %v1222 = vmul.f32 %v1208, 0.088388346
          %v1223 = vmul.f32 %v1210, 0.088388346
          %v1224 = vmul.f32 %v1212, 0.088388346
          %v1225 = vmul.f32 %v1214, 0.088388346
          %v1226 = vmul.f32 %v1216, 0.088388346
          %v1227 = vmul.f32 %v1218, 0.088388346
          %v1228 = vmul.f32 %v1220, 0.088388346
          %v1229 = vmul.f32 %v638, %v822
          %v1230 = vmul.f32 %v640, %v824
          %v1231 = vmul.f32 %v642, %v826
          %v1232 = vmul.f32 %v644, %v828
          %v1233 = vmul.f32 %v646, %v830
          %v1234 = vmul.f32 %v648, %v832
          %v1235 = vmul.f32 %v650, %v834
          %v1236 = vmul.f32 %v652, %v836
          %1237 = vadd.xlane.f32.xlu0 %v1229
          %v1238 = vpop.xlane.xlu0 %1237
          %1239 = vadd.xlane.f32.xlu0 %v1230
          %v1240 = vpop.xlane.xlu0 %1239
          %1241 = vadd.xlane.f32.xlu0 %v1231
          %v1242 = vpop.xlane.xlu0 %1241
          %1243 = vadd.xlane.f32.xlu0 %v1232
          %v1244 = vpop.xlane.xlu0 %1243
          %1245 = vadd.xlane.f32.xlu0 %v1233
          %v1246 = vpop.xlane.xlu0 %1245
          %1247 = vadd.xlane.f32.xlu0 %v1234
          %v1248 = vpop.xlane.xlu0 %1247
          %1249 = vadd.xlane.f32.xlu0 %v1235
          %v1250 = vpop.xlane.xlu0 %1249
          %1251 = vadd.xlane.f32.xlu0 %v1236
          %v1252 = vpop.xlane.xlu0 %1251
          %v1253 = vxor.u32 %v1238, 2147483648
          %v1254 = vxor.u32 %v1240, 2147483648
          %v1255 = vxor.u32 %v1242, 2147483648
          %v1256 = vxor.u32 %v1244, 2147483648
          %v1257 = vxor.u32 %v1246, 2147483648
          %v1258 = vxor.u32 %v1248, 2147483648
          %v1259 = vxor.u32 %v1250, 2147483648
          %v1260 = vxor.u32 %v1252, 2147483648
          %v1261 = vmul.f32 %v1253, 1.442695
          %v1262 = vpow.pop %v1261
          %v1263 = vmul.f32 %v1254, 1.442695
          %v1264 = vpow.pop %v1263
          %v1265 = vmul.f32 %v1255, 1.442695
          %v1266 = vpow.pop %v1265
          %v1267 = vmul.f32 %v1256, 1.442695
          %v1268 = vpow.pop %v1267
          %v1269 = vmul.f32 %v1257, 1.442695
          %v1270 = vpow.pop %v1269
          %v1271 = vmul.f32 %v1258, 1.442695
          %v1272 = vpow.pop %v1271
          %v1273 = vmul.f32 %v1259, 1.442695
          %v1274 = vpow.pop %v1273
          %v1275 = vmul.f32 %v1260, 1.442695
          %v1276 = vpow.pop %v1275
          %v1277 = vadd.f32 %v1262, 1.0
          %v1278 = vadd.f32 %v1264, 1.0
          %v1279 = vadd.f32 %v1266, 1.0
          %v1280 = vadd.f32 %v1268, 1.0
          %v1281 = vadd.f32 %v1270, 1.0
          %v1282 = vadd.f32 %v1272, 1.0
          %v1283 = vadd.f32 %v1274, 1.0
          %v1284 = vadd.f32 %v1276, 1.0
          %v1285 = vrcp.pop %v1277
          %v1286 = vmul.f32 1.0, %v1285
          %v1287 = vrcp.pop %v1278
          %v1288 = vmul.f32 1.0, %v1287
          %v1289 = vrcp.pop %v1279
          %v1290 = vmul.f32 1.0, %v1289
          %v1291 = vrcp.pop %v1280
          %v1292 = vmul.f32 1.0, %v1291
          %v1293 = vrcp.pop %v1281
          %v1294 = vmul.f32 1.0, %v1293
          %v1295 = vrcp.pop %v1282
          %v1296 = vmul.f32 1.0, %v1295
          %v1297 = vrcp.pop %v1283
          %v1298 = vmul.f32 1.0, %v1297
          %v1299 = vrcp.pop %v1284
          %v1300 = vmul.f32 1.0, %v1299
          %v1301 = vmul.f32 %v1286, 0.088388346
          %v1302 = vmul.f32 %v1288, 0.088388346
          %v1303 = vmul.f32 %v1290, 0.088388346
          %v1304 = vmul.f32 %v1292, 0.088388346
          %v1305 = vmul.f32 %v1294, 0.088388346
          %v1306 = vmul.f32 %v1296, 0.088388346
          %v1307 = vmul.f32 %v1298, 0.088388346
          %v1308 = vmul.f32 %v1300, 0.088388346
          %vm1309 = vcmask 64512
          %v1310 = vsel %vm1309, %v1221, 0.0
          %1311 = vadd.xlane.f32.xlu0 %v1310
          %v1312 = vpop.xlane.xlu0 %1311
          %v1313 = vsel %vm1309, %v1222, 0.0
          %1314 = vadd.xlane.f32.xlu0 %v1313
          %v1315 = vpop.xlane.xlu0 %1314
          %v1316 = vsel %vm1309, %v1223, 0.0
          %1317 = vadd.xlane.f32.xlu0 %v1316
          %v1318 = vpop.xlane.xlu0 %1317
          %v1319 = vsel %vm1309, %v1224, 0.0
          %1320 = vadd.xlane.f32.xlu0 %v1319
          %v1321 = vpop.xlane.xlu0 %1320
          %v1322 = vsel %vm1309, %v1225, 0.0
          %1323 = vadd.xlane.f32.xlu0 %v1322
          %v1324 = vpop.xlane.xlu0 %1323
          %v1325 = vsel %vm1309, %v1226, 0.0
          %1326 = vadd.xlane.f32.xlu0 %v1325
          %v1327 = vpop.xlane.xlu0 %1326
          %v1328 = vsel %vm1309, %v1227, 0.0
          %1329 = vadd.xlane.f32.xlu0 %v1328
          %v1330 = vpop.xlane.xlu0 %1329
          %v1331 = vsel %vm1309, %v1228, 0.0
          %1332 = vadd.xlane.f32.xlu0 %v1331
          %v1333 = vpop.xlane.xlu0 %1332
          %v1334 = vsub.f32 %v1312, %v1301
          %v1335 = vsub.f32 %v1315, %v1302
          %v1336 = vsub.f32 %v1318, %v1303
          %v1337 = vsub.f32 %v1321, %v1304
          %v1338 = vsub.f32 %v1324, %v1305
          %v1339 = vsub.f32 %v1327, %v1306
          %v1340 = vsub.f32 %v1330, %v1307
          %v1341 = vsub.f32 %v1333, %v1308
          %v1342 = vmul.f32 %v1334, 0.125
          %v1343 = vmul.f32 %v1335, 0.125
          %v1344 = vmul.f32 %v1336, 0.125
          %v1345 = vmul.f32 %v1337, 0.125
          %v1346 = vmul.f32 %v1338, 0.125
          %v1347 = vmul.f32 %v1339, 0.125
          %v1348 = vmul.f32 %v1340, 0.125
          %v1349 = vmul.f32 %v1341, 0.125
          %v1350 = vld [vmem:[%s436] sm:$0xff]
          %vm1351 = vcmp.eq.f32.partialorder %v1350, 0.0
          %v1360 = vlaneseq
          %v1361 = vand.u32 %v1360, 127
          %v1362 = vlaneseq
          %v1363 = vshrl.u32 %v1362, 7
          %v1364 = vsub.s32 %v1361, %v1363
          %v1365 = vrot.slane %v1342, %v1364
          %v1366 = vlaneseq
          %v1367 = vshrl.u32 %v1366, 7
          %v1368 = vsub.s32 %v1361, %v1367
          %v1369 = vrot.slane %v1343, %v1368
          %v1370 = vlaneseq
          %v1371 = vshrl.u32 %v1370, 7
          %v1372 = vsub.s32 %v1361, %v1371
          %v1373 = vrot.slane %v1344, %v1372
          %v1374 = vlaneseq
          %v1375 = vshrl.u32 %v1374, 7
          %v1376 = vsub.s32 %v1361, %v1375
          %v1377 = vrot.slane %v1345, %v1376
          %v1378 = vlaneseq
          %v1379 = vshrl.u32 %v1378, 7
          %v1380 = vsub.s32 %v1361, %v1379
          %v1381 = vrot.slane %v1346, %v1380
          %v1382 = vlaneseq
          %v1383 = vshrl.u32 %v1382, 7
          %v1384 = vsub.s32 %v1361, %v1383
          %v1385 = vrot.slane %v1347, %v1384
          %v1386 = vlaneseq
          %v1387 = vshrl.u32 %v1386, 7
          %v1388 = vsub.s32 %v1361, %v1387
          %v1389 = vrot.slane %v1348, %v1388
          %v1390 = vlaneseq
          %v1391 = vshrl.u32 %v1390, 7
          %v1392 = vsub.s32 %v1361, %v1391
          %v1393 = vrot.slane %v1349, %v1392
          %vm1394 = vcmask 1041409
          %v1395 = vsel %vm1394, %v1369, %v1365
          %vm1396 = vcmask 1042434
          %v1397 = vsel %vm1396, %v1373, %v1395
          %vm1398 = vcmask 1043459
          %v1399 = vsel %vm1398, %v1377, %v1397
          %vm1400 = vcmask 1044484
          %v1401 = vsel %vm1400, %v1381, %v1399
          %vm1402 = vcmask 1045509
          %v1403 = vsel %vm1402, %v1385, %v1401
          %vm1404 = vcmask 1046534
          %v1405 = vsel %vm1404, %v1389, %v1403
          %vm1406 = vcmask 1047559
          %v1407 = vsel %vm1406, %v1393, %v1405
          %v1409 = vsel %vm1351, -1e+09, %v1407
          %v1410 = vsel %vm1309, %v1409, -inf
          %1411 = vmax.xlane.f32.xlu0 %v1410
          %v1412 = vpop.xlane.xlu0 %1411
          %v1413 = vsub.f32 %v1409, %v1412
          %v1414 = vmul.f32 %v1413, 1.442695
          %v1415 = vpow.pop %v1414
          %v1416 = vsel %vm1309, %v1415, 0.0
          %1417 = vadd.xlane.f32.xlu0 %v1416
          %v1418 = vpop.xlane.xlu0 %1417
          %v1419 = vrcp.pop %v1418
          %v1420 = vmul.f32 %v1415, %v1419
          %v1421 = vpack.c.bf16 %v1420, %v1420
          %v1424 = vunpack.c.l.s4 1966171168
          %v1425 = vunpack.c.0.s8 %v1424
          %v1426 = vlaneseq
          %v1427 = vshrl.u32 %v1426, 7
          %v1428 = vsub.s32 %v1425, %v1427
          %v1429 = vrot.slane %v1421, %v1428
          %v1430 = vcombine.high %v1429, %v1429
          %v1432 = vunpack.c.l.s4 1966171168
          %v1433 = vunpack.c.0.s8 %v1432
          %v1434 = vlaneseq
          %v1435 = vshrl.u32 %v1434, 7
          %v1436 = vsub.s32 %v1433, %v1435
          %v1437 = vrot.slane %v1429, %v1436
          %v1439 = vunpack.c.l.s4 1966171168
          %v1440 = vunpack.c.0.s8 %v1439
          %v1441 = vlaneseq
          %v1442 = vshrl.u32 %v1441, 7
          %v1443 = vsub.s32 %v1440, %v1442
          %v1444 = vrot.slane %v1430, %v1443
          %v1445 = vcombine.high %v1437, %v1437
          %v1446 = vcombine.high %v1444, %v1444
          %v1447 = vunpack.i.l.s16 %v1437
          %v1448 = vunpack.i.h.s16 %v1437
          %v1449 = vunpack.i.l.s16 %v1444
          %v1450 = vunpack.i.h.s16 %v1444
          %v1451 = vunpack.i.l.s16 %v1445
          %v1452 = vunpack.i.h.s16 %v1445
          %v1453 = vunpack.i.l.s16 %v1446
          %v1454 = vunpack.i.h.s16 %v1446
          %v1455 = vpack.i.b16 %v1447, %v1447
          %v1456 = vlaneseq
          %v1457 = vshrl.u32 %v1456, 7
          %v1458 = vsub.s32 0, %v1457
          %v1459 = vrot.slane %v1455, %v1458
          %v1461 = vsel %vm1309, %v1459, 0
          %vm1463 = vcmask 1043456
          %v1465 = vsel %vm1463, %v444, 0
          %1467 = vmatprep.subr.bf16.mxu0 0
          %1468 = vmatpush1.bf16.msra.mxu0 0
          %1469 = vmatprep.subr.bf16.mxu0 0
          %1470 = vmatpush1.bf16.msra.mxu0 0
          %1471 = vmatprep.subr.bf16.mxu0 0
          %1472 = vmatpush1.bf16.msra.mxu0 0
          %1473 = vmatprep.subr.bf16.mxu0 0
          %1474 = vmatpush1.bf16.msra.mxu0 0
          %1475 = vmatprep.subr.bf16.mxu0 0
          %1476 = vmatpush1.bf16.msra.mxu0 0
          %1477 = vmatprep.subr.bf16.mxu0 0
          %1478 = vmatpush1.bf16.msra.mxu0 0
          %1479 = vmatprep.subr.bf16.mxu0 0
          %1480 = vmatpush1.bf16.msra.mxu0 0
          %1481 = vmatprep.subr.bf16.mxu0 0
          %1482 = vmatpush1.bf16.msra.mxu0 %v1465
          %1483 = vmatprep.subr.bf16.mxu0 0
          %1484 = vmatpush2.bf16.msra.mxu0 0
          %1485 = vmatprep.subr.bf16.mxu0 0
          %1486 = vmatpush2.bf16.msra.mxu0 0
          %1487 = vmatprep.subr.bf16.mxu0 0
          %1488 = vmatpush2.bf16.msra.mxu0 0
          %1489 = vmatprep.subr.bf16.mxu0 0
          %1490 = vmatpush2.bf16.msra.mxu0 0
          %1491 = vmatprep.subr.bf16.mxu0 0
          %1492 = vmatpush2.bf16.msra.mxu0 0
          %1493 = vmatprep.subr.bf16.mxu0 0
          %1494 = vmatpush2.bf16.msra.mxu0 0
          %1495 = vmatprep.subr.bf16.mxu0 0
          %1496 = vmatpush2.bf16.msra.mxu0 0
          %1497 = vmatprep.subr.bf16.mxu0 0
          %1498 = vmatpush2.bf16.msra.mxu0 0
          %1499 = vmatprep.mubr.bf16.mxu0 0
          %1500 = vmatmul.mubr.bf16.gmra.mxu0 %v1461
          %v1501 = vpop.f32.mrf.mxu0
          %v1502 = vadd.f32 0.0, %v1501
          %v1503 = vpop.f32.mrf.mxu0
          %v1504 = vpop.f32.mrf.mxu0
          %v1505 = vpop.f32.mrf.mxu0
          %1506 = vdwg.mxu0
          %v1507 = vpack.i.b16 %v1448, %v1448
          %v1508 = vlaneseq
          %v1509 = vshrl.u32 %v1508, 7
          %v1510 = vsub.s32 0, %v1509
          %v1511 = vrot.slane %v1507, %v1510
          %v1513 = vsel %vm1309, %v1511, 0
          %v1516 = vsel %vm1463, %v445, 0
          %1518 = vmatprep.subr.bf16.mxu0 0
          %1519 = vmatpush1.bf16.msra.mxu0 0
          %1520 = vmatprep.subr.bf16.mxu0 0
          %1521 = vmatpush1.bf16.msra.mxu0 0
          %1522 = vmatprep.subr.bf16.mxu0 0
          %1523 = vmatpush1.bf16.msra.mxu0 0
          %1524 = vmatprep.subr.bf16.mxu0 0
          %1525 = vmatpush1.bf16.msra.mxu0 0
          %1526 = vmatprep.subr.bf16.mxu0 0
          %1527 = vmatpush1.bf16.msra.mxu0 0
          %1528 = vmatprep.subr.bf16.mxu0 0
          %1529 = vmatpush1.bf16.msra.mxu0 0
          %1530 = vmatprep.subr.bf16.mxu0 0
          %1531 = vmatpush1.bf16.msra.mxu0 0
          %1532 = vmatprep.subr.bf16.mxu0 0
          %1533 = vmatpush1.bf16.msra.mxu0 %v1516
          %1534 = vmatprep.subr.bf16.mxu0 0
          %1535 = vmatpush2.bf16.msra.mxu0 0
          %1536 = vmatprep.subr.bf16.mxu0 0
          %1537 = vmatpush2.bf16.msra.mxu0 0
          %1538 = vmatprep.subr.bf16.mxu0 0
          %1539 = vmatpush2.bf16.msra.mxu0 0
          %1540 = vmatprep.subr.bf16.mxu0 0
          %1541 = vmatpush2.bf16.msra.mxu0 0
          %1542 = vmatprep.subr.bf16.mxu0 0
          %1543 = vmatpush2.bf16.msra.mxu0 0
          %1544 = vmatprep.subr.bf16.mxu0 0
          %1545 = vmatpush2.bf16.msra.mxu0 0
          %1546 = vmatprep.subr.bf16.mxu0 0
          %1547 = vmatpush2.bf16.msra.mxu0 0
          %1548 = vmatprep.subr.bf16.mxu0 0
          %1549 = vmatpush2.bf16.msra.mxu0 0
          %1550 = vmatprep.mubr.bf16.mxu0 0
          %1551 = vmatmul.mubr.bf16.gmra.mxu0 %v1513
          %v1552 = vpop.f32.mrf.mxu0
          %v1553 = vadd.f32 0.0, %v1552
          %v1554 = vpop.f32.mrf.mxu0
          %v1555 = vpop.f32.mrf.mxu0
          %v1556 = vpop.f32.mrf.mxu0
          %1557 = vdwg.mxu0
          %v1558 = vpack.i.b16 %v1449, %v1449
          %v1559 = vlaneseq
          %v1560 = vshrl.u32 %v1559, 7
          %v1561 = vsub.s32 0, %v1560
          %v1562 = vrot.slane %v1558, %v1561
          %v1564 = vsel %vm1309, %v1562, 0
          %v1567 = vsel %vm1463, %v446, 0
          %1569 = vmatprep.subr.bf16.mxu0 0
          %1570 = vmatpush1.bf16.msra.mxu0 0
          %1571 = vmatprep.subr.bf16.mxu0 0
          %1572 = vmatpush1.bf16.msra.mxu0 0
          %1573 = vmatprep.subr.bf16.mxu0 0
          %1574 = vmatpush1.bf16.msra.mxu0 0
          %1575 = vmatprep.subr.bf16.mxu0 0
          %1576 = vmatpush1.bf16.msra.mxu0 0
          %1577 = vmatprep.subr.bf16.mxu0 0
          %1578 = vmatpush1.bf16.msra.mxu0 0
          %1579 = vmatprep.subr.bf16.mxu0 0
          %1580 = vmatpush1.bf16.msra.mxu0 0
          %1581 = vmatprep.subr.bf16.mxu0 0
          %1582 = vmatpush1.bf16.msra.mxu0 0
          %1583 = vmatprep.subr.bf16.mxu0 0
          %1584 = vmatpush1.bf16.msra.mxu0 %v1567
          %1585 = vmatprep.subr.bf16.mxu0 0
          %1586 = vmatpush2.bf16.msra.mxu0 0
          %1587 = vmatprep.subr.bf16.mxu0 0
          %1588 = vmatpush2.bf16.msra.mxu0 0
          %1589 = vmatprep.subr.bf16.mxu0 0
          %1590 = vmatpush2.bf16.msra.mxu0 0
          %1591 = vmatprep.subr.bf16.mxu0 0
          %1592 = vmatpush2.bf16.msra.mxu0 0
          %1593 = vmatprep.subr.bf16.mxu0 0
          %1594 = vmatpush2.bf16.msra.mxu0 0
          %1595 = vmatprep.subr.bf16.mxu0 0
          %1596 = vmatpush2.bf16.msra.mxu0 0
          %1597 = vmatprep.subr.bf16.mxu0 0
          %1598 = vmatpush2.bf16.msra.mxu0 0
          %1599 = vmatprep.subr.bf16.mxu0 0
          %1600 = vmatpush2.bf16.msra.mxu0 0
          %1601 = vmatprep.mubr.bf16.mxu0 0
          %1602 = vmatmul.mubr.bf16.gmra.mxu0 %v1564
          %v1603 = vpop.f32.mrf.mxu0
          %v1604 = vadd.f32 0.0, %v1603
          %v1605 = vpop.f32.mrf.mxu0
          %v1606 = vpop.f32.mrf.mxu0
          %v1607 = vpop.f32.mrf.mxu0
          %1608 = vdwg.mxu0
          %v1609 = vpack.i.b16 %v1450, %v1450
          %v1610 = vlaneseq
          %v1611 = vshrl.u32 %v1610, 7
          %v1612 = vsub.s32 0, %v1611
          %v1613 = vrot.slane %v1609, %v1612
          %v1615 = vsel %vm1309, %v1613, 0
          %v1618 = vsel %vm1463, %v447, 0
          %1620 = vmatprep.subr.bf16.mxu0 0
          %1621 = vmatpush1.bf16.msra.mxu0 0
          %1622 = vmatprep.subr.bf16.mxu0 0
          %1623 = vmatpush1.bf16.msra.mxu0 0
          %1624 = vmatprep.subr.bf16.mxu0 0
          %1625 = vmatpush1.bf16.msra.mxu0 0
          %1626 = vmatprep.subr.bf16.mxu0 0
          %1627 = vmatpush1.bf16.msra.mxu0 0
          %1628 = vmatprep.subr.bf16.mxu0 0
          %1629 = vmatpush1.bf16.msra.mxu0 0
          %1630 = vmatprep.subr.bf16.mxu0 0
          %1631 = vmatpush1.bf16.msra.mxu0 0
          %1632 = vmatprep.subr.bf16.mxu0 0
          %1633 = vmatpush1.bf16.msra.mxu0 0
          %1634 = vmatprep.subr.bf16.mxu0 0
          %1635 = vmatpush1.bf16.msra.mxu0 %v1618
          %1636 = vmatprep.subr.bf16.mxu0 0
          %1637 = vmatpush2.bf16.msra.mxu0 0
          %1638 = vmatprep.subr.bf16.mxu0 0
          %1639 = vmatpush2.bf16.msra.mxu0 0
          %1640 = vmatprep.subr.bf16.mxu0 0
          %1641 = vmatpush2.bf16.msra.mxu0 0
          %1642 = vmatprep.subr.bf16.mxu0 0
          %1643 = vmatpush2.bf16.msra.mxu0 0
          %1644 = vmatprep.subr.bf16.mxu0 0
          %1645 = vmatpush2.bf16.msra.mxu0 0
          %1646 = vmatprep.subr.bf16.mxu0 0
          %1647 = vmatpush2.bf16.msra.mxu0 0
          %1648 = vmatprep.subr.bf16.mxu0 0
          %1649 = vmatpush2.bf16.msra.mxu0 0
          %1650 = vmatprep.subr.bf16.mxu0 0
          %1651 = vmatpush2.bf16.msra.mxu0 0
          %1652 = vmatprep.mubr.bf16.mxu0 0
          %1653 = vmatmul.mubr.bf16.gmra.mxu0 %v1615
          %v1654 = vpop.f32.mrf.mxu0
          %v1655 = vadd.f32 0.0, %v1654
          %v1656 = vpop.f32.mrf.mxu0
          %v1657 = vpop.f32.mrf.mxu0
          %v1658 = vpop.f32.mrf.mxu0
          %1659 = vdwg.mxu0
          %v1660 = vpack.i.b16 %v1451, %v1451
          %v1661 = vlaneseq
          %v1662 = vshrl.u32 %v1661, 7
          %v1663 = vsub.s32 0, %v1662
          %v1664 = vrot.slane %v1660, %v1663
          %v1666 = vsel %vm1309, %v1664, 0
          %v1669 = vsel %vm1463, %v448, 0
          %1671 = vmatprep.subr.bf16.mxu0 0
          %1672 = vmatpush1.bf16.msra.mxu0 0
          %1673 = vmatprep.subr.bf16.mxu0 0
          %1674 = vmatpush1.bf16.msra.mxu0 0
          %1675 = vmatprep.subr.bf16.mxu0 0
          %1676 = vmatpush1.bf16.msra.mxu0 0
          %1677 = vmatprep.subr.bf16.mxu0 0
          %1678 = vmatpush1.bf16.msra.mxu0 0
          %1679 = vmatprep.subr.bf16.mxu0 0
          %1680 = vmatpush1.bf16.msra.mxu0 0
          %1681 = vmatprep.subr.bf16.mxu0 0
          %1682 = vmatpush1.bf16.msra.mxu0 0
          %1683 = vmatprep.subr.bf16.mxu0 0
          %1684 = vmatpush1.bf16.msra.mxu0 0
          %1685 = vmatprep.subr.bf16.mxu0 0
          %1686 = vmatpush1.bf16.msra.mxu0 %v1669
          %1687 = vmatprep.subr.bf16.mxu0 0
          %1688 = vmatpush2.bf16.msra.mxu0 0
          %1689 = vmatprep.subr.bf16.mxu0 0
          %1690 = vmatpush2.bf16.msra.mxu0 0
          %1691 = vmatprep.subr.bf16.mxu0 0
          %1692 = vmatpush2.bf16.msra.mxu0 0
          %1693 = vmatprep.subr.bf16.mxu0 0
          %1694 = vmatpush2.bf16.msra.mxu0 0
          %1695 = vmatprep.subr.bf16.mxu0 0
          %1696 = vmatpush2.bf16.msra.mxu0 0
          %1697 = vmatprep.subr.bf16.mxu0 0
          %1698 = vmatpush2.bf16.msra.mxu0 0
          %1699 = vmatprep.subr.bf16.mxu0 0
          %1700 = vmatpush2.bf16.msra.mxu0 0
          %1701 = vmatprep.subr.bf16.mxu0 0
          %1702 = vmatpush2.bf16.msra.mxu0 0
          %1703 = vmatprep.mubr.bf16.mxu0 0
          %1704 = vmatmul.mubr.bf16.gmra.mxu0 %v1666
          %v1705 = vpop.f32.mrf.mxu0
          %v1706 = vadd.f32 0.0, %v1705
          %v1707 = vpop.f32.mrf.mxu0
          %v1708 = vpop.f32.mrf.mxu0
          %v1709 = vpop.f32.mrf.mxu0
          %1710 = vdwg.mxu0
          %v1711 = vpack.i.b16 %v1452, %v1452
          %v1712 = vlaneseq
          %v1713 = vshrl.u32 %v1712, 7
          %v1714 = vsub.s32 0, %v1713
          %v1715 = vrot.slane %v1711, %v1714
          %v1717 = vsel %vm1309, %v1715, 0
          %v1720 = vsel %vm1463, %v449, 0
          %1722 = vmatprep.subr.bf16.mxu0 0
          %1723 = vmatpush1.bf16.msra.mxu0 0
          %1724 = vmatprep.subr.bf16.mxu0 0
          %1725 = vmatpush1.bf16.msra.mxu0 0
          %1726 = vmatprep.subr.bf16.mxu0 0
          %1727 = vmatpush1.bf16.msra.mxu0 0
          %1728 = vmatprep.subr.bf16.mxu0 0
          %1729 = vmatpush1.bf16.msra.mxu0 0
          %1730 = vmatprep.subr.bf16.mxu0 0
          %1731 = vmatpush1.bf16.msra.mxu0 0
          %1732 = vmatprep.subr.bf16.mxu0 0
          %1733 = vmatpush1.bf16.msra.mxu0 0
          %1734 = vmatprep.subr.bf16.mxu0 0
          %1735 = vmatpush1.bf16.msra.mxu0 0
          %1736 = vmatprep.subr.bf16.mxu0 0
          %1737 = vmatpush1.bf16.msra.mxu0 %v1720
          %1738 = vmatprep.subr.bf16.mxu0 0
          %1739 = vmatpush2.bf16.msra.mxu0 0
          %1740 = vmatprep.subr.bf16.mxu0 0
          %1741 = vmatpush2.bf16.msra.mxu0 0
          %1742 = vmatprep.subr.bf16.mxu0 0
          %1743 = vmatpush2.bf16.msra.mxu0 0
          %1744 = vmatprep.subr.bf16.mxu0 0
          %1745 = vmatpush2.bf16.msra.mxu0 0
          %1746 = vmatprep.subr.bf16.mxu0 0
          %1747 = vmatpush2.bf16.msra.mxu0 0
          %1748 = vmatprep.subr.bf16.mxu0 0
          %1749 = vmatpush2.bf16.msra.mxu0 0
          %1750 = vmatprep.subr.bf16.mxu0 0
          %1751 = vmatpush2.bf16.msra.mxu0 0
          %1752 = vmatprep.subr.bf16.mxu0 0
          %1753 = vmatpush2.bf16.msra.mxu0 0
          %1754 = vmatprep.mubr.bf16.mxu0 0
          %1755 = vmatmul.mubr.bf16.gmra.mxu0 %v1717
          %v1756 = vpop.f32.mrf.mxu0
          %v1757 = vadd.f32 0.0, %v1756
          %v1758 = vpop.f32.mrf.mxu0
          %v1759 = vpop.f32.mrf.mxu0
          %v1760 = vpop.f32.mrf.mxu0
          %1761 = vdwg.mxu0
          %v1762 = vpack.i.b16 %v1453, %v1453
          %v1763 = vlaneseq
          %v1764 = vshrl.u32 %v1763, 7
          %v1765 = vsub.s32 0, %v1764
          %v1766 = vrot.slane %v1762, %v1765
          %v1768 = vsel %vm1309, %v1766, 0
          %v1771 = vsel %vm1463, %v450, 0
          %1773 = vmatprep.subr.bf16.mxu0 0
          %1774 = vmatpush1.bf16.msra.mxu0 0
          %1775 = vmatprep.subr.bf16.mxu0 0
          %1776 = vmatpush1.bf16.msra.mxu0 0
          %1777 = vmatprep.subr.bf16.mxu0 0
          %1778 = vmatpush1.bf16.msra.mxu0 0
          %1779 = vmatprep.subr.bf16.mxu0 0
          %1780 = vmatpush1.bf16.msra.mxu0 0
          %1781 = vmatprep.subr.bf16.mxu0 0
          %1782 = vmatpush1.bf16.msra.mxu0 0
          %1783 = vmatprep.subr.bf16.mxu0 0
          %1784 = vmatpush1.bf16.msra.mxu0 0
          %1785 = vmatprep.subr.bf16.mxu0 0
          %1786 = vmatpush1.bf16.msra.mxu0 0
          %1787 = vmatprep.subr.bf16.mxu0 0
          %1788 = vmatpush1.bf16.msra.mxu0 %v1771
          %1789 = vmatprep.subr.bf16.mxu0 0
          %1790 = vmatpush2.bf16.msra.mxu0 0
          %1791 = vmatprep.subr.bf16.mxu0 0
          %1792 = vmatpush2.bf16.msra.mxu0 0
          %1793 = vmatprep.subr.bf16.mxu0 0
          %1794 = vmatpush2.bf16.msra.mxu0 0
          %1795 = vmatprep.subr.bf16.mxu0 0
          %1796 = vmatpush2.bf16.msra.mxu0 0
          %1797 = vmatprep.subr.bf16.mxu0 0
          %1798 = vmatpush2.bf16.msra.mxu0 0
          %1799 = vmatprep.subr.bf16.mxu0 0
          %1800 = vmatpush2.bf16.msra.mxu0 0
          %1801 = vmatprep.subr.bf16.mxu0 0
          %1802 = vmatpush2.bf16.msra.mxu0 0
          %1803 = vmatprep.subr.bf16.mxu0 0
          %1804 = vmatpush2.bf16.msra.mxu0 0
          %1805 = vmatprep.mubr.bf16.mxu0 0
          %1806 = vmatmul.mubr.bf16.gmra.mxu0 %v1768
          %v1807 = vpop.f32.mrf.mxu0
          %v1808 = vadd.f32 0.0, %v1807
          %v1809 = vpop.f32.mrf.mxu0
          %v1810 = vpop.f32.mrf.mxu0
          %v1811 = vpop.f32.mrf.mxu0
          %1812 = vdwg.mxu0
          %v1813 = vpack.i.b16 %v1454, %v1454
          %v1814 = vlaneseq
          %v1815 = vshrl.u32 %v1814, 7
          %v1816 = vsub.s32 0, %v1815
          %v1817 = vrot.slane %v1813, %v1816
          %v1819 = vsel %vm1309, %v1817, 0
          %v1822 = vsel %vm1463, %v451, 0
          %1824 = vmatprep.subr.bf16.mxu0 0
          %1825 = vmatpush1.bf16.msra.mxu0 0
          %1826 = vmatprep.subr.bf16.mxu0 0
          %1827 = vmatpush1.bf16.msra.mxu0 0
          %1828 = vmatprep.subr.bf16.mxu0 0
          %1829 = vmatpush1.bf16.msra.mxu0 0
          %1830 = vmatprep.subr.bf16.mxu0 0
          %1831 = vmatpush1.bf16.msra.mxu0 0
          %1832 = vmatprep.subr.bf16.mxu0 0
          %1833 = vmatpush1.bf16.msra.mxu0 0
          %1834 = vmatprep.subr.bf16.mxu0 0
          %1835 = vmatpush1.bf16.msra.mxu0 0
          %1836 = vmatprep.subr.bf16.mxu0 0
          %1837 = vmatpush1.bf16.msra.mxu0 0
          %1838 = vmatprep.subr.bf16.mxu0 0
          %1839 = vmatpush1.bf16.msra.mxu0 %v1822
          %1840 = vmatprep.subr.bf16.mxu0 0
          %1841 = vmatpush2.bf16.msra.mxu0 0
          %1842 = vmatprep.subr.bf16.mxu0 0
          %1843 = vmatpush2.bf16.msra.mxu0 0
          %1844 = vmatprep.subr.bf16.mxu0 0
          %1845 = vmatpush2.bf16.msra.mxu0 0
          %1846 = vmatprep.subr.bf16.mxu0 0
          %1847 = vmatpush2.bf16.msra.mxu0 0
          %1848 = vmatprep.subr.bf16.mxu0 0
          %1849 = vmatpush2.bf16.msra.mxu0 0
          %1850 = vmatprep.subr.bf16.mxu0 0
          %1851 = vmatpush2.bf16.msra.mxu0 0
          %1852 = vmatprep.subr.bf16.mxu0 0
          %1853 = vmatpush2.bf16.msra.mxu0 0
          %1854 = vmatprep.subr.bf16.mxu0 0
          %1855 = vmatpush2.bf16.msra.mxu0 0
          %1856 = vmatprep.mubr.bf16.mxu0 0
          %1857 = vmatmul.mubr.bf16.gmra.mxu0 %v1819
          %v1858 = vpop.f32.mrf.mxu0
          %v1859 = vadd.f32 0.0, %v1858
          %v1860 = vpop.f32.mrf.mxu0
          %v1861 = vpop.f32.mrf.mxu0
          %v1862 = vpop.f32.mrf.mxu0
          %1863 = vdwg.mxu0
          %v1864 = vpack.c.bf16 %v1502, %v1502
          %v1865 = vpack.c.bf16 %v1553, %v1553
          %v1866 = vpack.c.bf16 %v1604, %v1604
          %v1867 = vpack.c.bf16 %v1655, %v1655
          %v1868 = vpack.c.bf16 %v1706, %v1706
          %v1869 = vpack.c.bf16 %v1757, %v1757
          %v1870 = vpack.c.bf16 %v1808, %v1808
          %v1871 = vpack.c.bf16 %v1859, %v1859
          %v1872 = vld [vmem:[#allocation9] sm:$0xf]
          %v1873 = vld [vmem:[#allocation9 + $0x4] sm:$0xf]
          %v1874 = vld [vmem:[#allocation9 + $0x8] sm:$0xf]
          %v1875 = vld [vmem:[#allocation9 + $0xc] sm:$0xf]
          %v1876 = vld [vmem:[#allocation9 + $0x10] sm:$0xf]
          %v1877 = vld [vmem:[#allocation9 + $0x14] sm:$0xf]
          %v1878 = vld [vmem:[#allocation9 + $0x18] sm:$0xf]
          %v1879 = vld [vmem:[#allocation9 + $0x1c] sm:$0xf]
          %v1880 = vld [vmem:[#allocation9 + $0x20] sm:$0xf]
          %v1881 = vld [vmem:[#allocation9 + $0x24] sm:$0xf]
          %v1882 = vld [vmem:[#allocation9 + $0x28] sm:$0xf]
          %v1883 = vld [vmem:[#allocation9 + $0x2c] sm:$0xf]
          %v1884 = vld [vmem:[#allocation9 + $0x30] sm:$0xf]
          %v1885 = vld [vmem:[#allocation9 + $0x34] sm:$0xf]
          %v1886 = vld [vmem:[#allocation9 + $0x38] sm:$0xf]
          %v1887 = vld [vmem:[#allocation9 + $0x3c] sm:$0xf]
          %v1888 = vld [vmem:[#allocation9 + $0x40] sm:$0xf]
          %v1889 = vld [vmem:[#allocation9 + $0x44] sm:$0xf]
          %v1890 = vld [vmem:[#allocation9 + $0x48] sm:$0xf]
          %v1891 = vld [vmem:[#allocation9 + $0x4c] sm:$0xf]
          %v1892 = vld [vmem:[#allocation9 + $0x50] sm:$0xf]
          %v1893 = vld [vmem:[#allocation9 + $0x54] sm:$0xf]
          %v1894 = vld [vmem:[#allocation9 + $0x58] sm:$0xf]
          %v1895 = vld [vmem:[#allocation9 + $0x5c] sm:$0xf]
          %v1896 = vld [vmem:[#allocation9 + $0x60] sm:$0xf]
          %v1897 = vld [vmem:[#allocation9 + $0x64] sm:$0xf]
          %v1898 = vld [vmem:[#allocation9 + $0x68] sm:$0xf]
          %v1899 = vld [vmem:[#allocation9 + $0x6c] sm:$0xf]
          %v1900 = vld [vmem:[#allocation9 + $0x70] sm:$0xf]
          %v1901 = vld [vmem:[#allocation9 + $0x74] sm:$0xf]
          %v1902 = vld [vmem:[#allocation9 + $0x78] sm:$0xf]
          %v1903 = vld [vmem:[#allocation9 + $0x7c] sm:$0xf]
          %v1904 = vpack.c.b16 %v476, %v476
          %v1905 = vpack.c.b16 %v477, %v477
          %v1906 = vpack.c.b16 %v478, %v478
          %v1907 = vpack.c.b16 %v479, %v479
          %v1908 = vpack.c.b16 %v480, %v480
          %v1909 = vpack.c.b16 %v481, %v481
          %v1910 = vpack.c.b16 %v482, %v482
          %v1911 = vpack.c.b16 %v483, %v483
          %v1912 = vunpack.c.l.b16 %v1904
          %v1913 = vunpack.c.l.b16 %v1905
          %v1914 = vunpack.c.l.b16 %v1906
          %v1915 = vunpack.c.l.b16 %v1907
          %v1916 = vunpack.c.l.b16 %v1908
          %v1917 = vunpack.c.l.b16 %v1909
          %v1918 = vunpack.c.l.b16 %v1910
          %v1919 = vunpack.c.l.b16 %v1911
          %v1920 = vrot.slane %v1912, 7
          %v1921 = vrot.slane %v1913, 6
          %v1922 = vsel %vm1394, %v1921, %v1920
          %v1923 = vrot.slane %v1914, 5
          %v1924 = vsel %vm1396, %v1923, %v1922
          %v1925 = vrot.slane %v1915, 4
          %v1926 = vsel %vm1398, %v1925, %v1924
          %v1927 = vrot.slane %v1916, 3
          %v1928 = vsel %vm1400, %v1927, %v1926
          %v1929 = vrot.slane %v1917, 2
          %v1930 = vsel %vm1402, %v1929, %v1928
          %v1931 = vrot.slane %v1918, 1
          %v1932 = vsel %vm1404, %v1931, %v1930
          %v1933 = vsel %vm1406, %v1919, %v1932
          %v1934 = vpack.c.b16 %v1933, %v1933
          %v1952 = vunpack.c.l.b16 %v1888
          %v1953 = vunpack.c.l.b16 %v1889
          %v1954 = vunpack.c.l.b16 %v1890
          %v1955 = vunpack.c.l.b16 %v1891
          %v1956 = vunpack.c.l.b16 %v1892
          %v1957 = vunpack.c.l.b16 %v1893
          %v1958 = vunpack.c.l.b16 %v1894
          %v1959 = vunpack.c.l.b16 %v1895
          %v1960 = vunpack.c.l.b16 %v1896
          %v1961 = vunpack.c.l.b16 %v1897
          %v1962 = vunpack.c.l.b16 %v1898
          %v1963 = vunpack.c.l.b16 %v1899
          %v1964 = vunpack.c.l.b16 %v1900
          %v1965 = vunpack.c.l.b16 %v1901
          %v1966 = vunpack.c.l.b16 %v1902
          %v1967 = vunpack.c.l.b16 %v1903
          %v1968 = vpack.c.b16 %v1953, %v1952
          %v1969 = vpack.c.b16 %v1955, %v1954
          %v1970 = vpack.c.b16 %v1957, %v1956
          %v1971 = vpack.c.b16 %v1959, %v1958
          %v1972 = vpack.c.b16 %v1961, %v1960
          %v1973 = vpack.c.b16 %v1963, %v1962
          %v1974 = vpack.c.b16 %v1965, %v1964
          %v1975 = vpack.c.b16 %v1967, %v1966
          %1984 = vmatprep.subr.bf16.mxu0 0
          %1985 = vmatpush1.bf16.msra.mxu0 %v1975
          %1986 = vmatprep.subr.bf16.mxu0 0
          %1987 = vmatpush1.bf16.msra.mxu0 %v1974
          %1988 = vmatprep.subr.bf16.mxu0 0
          %1989 = vmatpush1.bf16.msra.mxu0 %v1973
          %1990 = vmatprep.subr.bf16.mxu0 0
          %1991 = vmatpush1.bf16.msra.mxu0 %v1972
          %1992 = vmatprep.subr.bf16.mxu0 0
          %1993 = vmatpush1.bf16.msra.mxu0 %v1971
          %1994 = vmatprep.subr.bf16.mxu0 0
          %1995 = vmatpush1.bf16.msra.mxu0 %v1970
          %1996 = vmatprep.subr.bf16.mxu0 0
          %1997 = vmatpush1.bf16.msra.mxu0 %v1969
          %1998 = vmatprep.subr.bf16.mxu0 0
          %1999 = vmatpush1.bf16.msra.mxu0 %v1968
          %2000 = vmatprep.subr.bf16.mxu0 0
          %2001 = vmatpush2.bf16.msra.mxu0 0
          %2002 = vmatprep.subr.bf16.mxu0 0
          %2003 = vmatpush2.bf16.msra.mxu0 0
          %2004 = vmatprep.subr.bf16.mxu0 0
          %2005 = vmatpush2.bf16.msra.mxu0 0
          %2006 = vmatprep.subr.bf16.mxu0 0
          %2007 = vmatpush2.bf16.msra.mxu0 0
          %2008 = vmatprep.subr.bf16.mxu0 0
          %2009 = vmatpush2.bf16.msra.mxu0 0
          %2010 = vmatprep.subr.bf16.mxu0 0
          %2011 = vmatpush2.bf16.msra.mxu0 0
          %2012 = vmatprep.subr.bf16.mxu0 0
          %2013 = vmatpush2.bf16.msra.mxu0 0
          %2014 = vmatprep.subr.bf16.mxu0 0
          %2015 = vmatpush2.bf16.msra.mxu0 0
          %2016 = vmatprep.mubr.bf16.mxu0 0
          %2017 = vmatmul.mubr.bf16.gmra.mxu0 %v1934
          %v2018 = vpop.f32.mrf.mxu0
          %v2019 = vadd.f32 0.0, %v2018
          %v2020 = vpop.f32.mrf.mxu0
          %v2021 = vpop.f32.mrf.mxu0
          %v2022 = vpop.f32.mrf.mxu0
          %2023 = vdwg.mxu0
          %v2032 = vunpack.c.l.b16 %v1864
          %v2033 = vunpack.c.l.b16 %v1865
          %v2034 = vunpack.c.l.b16 %v1866
          %v2035 = vunpack.c.l.b16 %v1867
          %v2036 = vunpack.c.l.b16 %v1868
          %v2037 = vunpack.c.l.b16 %v1869
          %v2038 = vunpack.c.l.b16 %v1870
          %v2039 = vunpack.c.l.b16 %v1871
          %v2040 = vrot.slane %v2033, 7
          %v2041 = vsel %vm1394, %v2040, %v2032
          %v2042 = vrot.slane %v2034, 6
          %v2043 = vsel %vm1396, %v2042, %v2041
          %v2044 = vrot.slane %v2035, 5
          %v2045 = vsel %vm1398, %v2044, %v2043
          %v2046 = vrot.slane %v2036, 4
          %v2047 = vsel %vm1400, %v2046, %v2045
          %v2048 = vrot.slane %v2037, 3
          %v2049 = vsel %vm1402, %v2048, %v2047
          %v2050 = vrot.slane %v2038, 2
          %v2051 = vsel %vm1404, %v2050, %v2049
          %v2052 = vrot.slane %v2039, 1
          %v2053 = vsel %vm1406, %v2052, %v2051
          %v2054 = vpack.c.b16 %v2053, %v2053
          %v2072 = vunpack.c.l.b16 %v1872
          %v2073 = vunpack.c.l.b16 %v1873
          %v2074 = vunpack.c.l.b16 %v1874
          %v2075 = vunpack.c.l.b16 %v1875
          %v2076 = vunpack.c.l.b16 %v1876
          %v2077 = vunpack.c.l.b16 %v1877
          %v2078 = vunpack.c.l.b16 %v1878
          %v2079 = vunpack.c.l.b16 %v1879
          %v2080 = vunpack.c.l.b16 %v1880
          %v2081 = vunpack.c.l.b16 %v1881
          %v2082 = vunpack.c.l.b16 %v1882
          %v2083 = vunpack.c.l.b16 %v1883
          %v2084 = vunpack.c.l.b16 %v1884
          %v2085 = vunpack.c.l.b16 %v1885
          %v2086 = vunpack.c.l.b16 %v1886
          %v2087 = vunpack.c.l.b16 %v1887
          %v2088 = vpack.c.b16 %v2073, %v2072
          %v2089 = vpack.c.b16 %v2075, %v2074
          %v2090 = vpack.c.b16 %v2077, %v2076
          %v2091 = vpack.c.b16 %v2079, %v2078
          %v2092 = vpack.c.b16 %v2081, %v2080
          %v2093 = vpack.c.b16 %v2083, %v2082
          %v2094 = vpack.c.b16 %v2085, %v2084
          %v2095 = vpack.c.b16 %v2087, %v2086
          %2104 = vmatprep.subr.bf16.mxu0 0
          %2105 = vmatpush1.bf16.msra.mxu0 %v2095
          %2106 = vmatprep.subr.bf16.mxu0 0
          %2107 = vmatpush1.bf16.msra.mxu0 %v2094
          %2108 = vmatprep.subr.bf16.mxu0 0
          %2109 = vmatpush1.bf16.msra.mxu0 %v2093
          %2110 = vmatprep.subr.bf16.mxu0 0
          %2111 = vmatpush1.bf16.msra.mxu0 %v2092
          %2112 = vmatprep.subr.bf16.mxu0 0
          %2113 = vmatpush1.bf16.msra.mxu0 %v2091
          %2114 = vmatprep.subr.bf16.mxu0 0
          %2115 = vmatpush1.bf16.msra.mxu0 %v2090
          %2116 = vmatprep.subr.bf16.mxu0 0
          %2117 = vmatpush1.bf16.msra.mxu0 %v2089
          %2118 = vmatprep.subr.bf16.mxu0 0
          %2119 = vmatpush1.bf16.msra.mxu0 %v2088
          %2120 = vmatprep.subr.bf16.mxu0 0
          %2121 = vmatpush2.bf16.msra.mxu0 0
          %2122 = vmatprep.subr.bf16.mxu0 0
          %2123 = vmatpush2.bf16.msra.mxu0 0
          %2124 = vmatprep.subr.bf16.mxu0 0
          %2125 = vmatpush2.bf16.msra.mxu0 0
          %2126 = vmatprep.subr.bf16.mxu0 0
          %2127 = vmatpush2.bf16.msra.mxu0 0
          %2128 = vmatprep.subr.bf16.mxu0 0
          %2129 = vmatpush2.bf16.msra.mxu0 0
          %2130 = vmatprep.subr.bf16.mxu0 0
          %2131 = vmatpush2.bf16.msra.mxu0 0
          %2132 = vmatprep.subr.bf16.mxu0 0
          %2133 = vmatpush2.bf16.msra.mxu0 0
          %2134 = vmatprep.subr.bf16.mxu0 0
          %2135 = vmatpush2.bf16.msra.mxu0 0
          %2136 = vmatprep.mubr.bf16.mxu0 0
          %2137 = vmatmul.mubr.bf16.gmra.mxu0 %v2054
          %v2138 = vpop.f32.mrf.mxu0
          %v2139 = vadd.f32 %v2019, %v2138
          %v2140 = vpop.f32.mrf.mxu0
          %v2141 = vpop.f32.mrf.mxu0
          %v2142 = vpop.f32.mrf.mxu0
          %2143 = vdwg.mxu0
          %v2144 = vld [vmem:[%s6] sm:$0x1]
          %v2146 = vlaneseq
          %v2147 = vshrl.u32 %v2146, 7
          %v2148 = vsub.s32 0, %v2147
          %v2149 = vrot.slane %v2144, %v2148
          %v2151 = vadd.f32 %v2139, %v2149
          %v2152 = vpack.c.bf16 %v2151, %v2151
          %2153 = vst [vmem:[#allocation2] sm:$0xf] %v2152
        $region76: #{tpu_custom_call.1} parent=51 // pred_fallthru
          _
        %v2154 = vld [vmem:[#allocation2] sm:$0xf]
        %v2155 = vld [vmem:[%s390] sm:$0xf]
        %v2156 = vld [vmem:[%s390 + $0x4] sm:$0xf]
        %v2157 = vld [vmem:[%s390 + $0x8] sm:$0xf]
        %v2158 = vld [vmem:[%s390 + $0xc] sm:$0xf]
        %v2159 = vld [vmem:[%s390 + $0x10] sm:$0xf]
        %v2160 = vld [vmem:[%s390 + $0x14] sm:$0xf]
        %v2161 = vld [vmem:[%s390 + $0x18] sm:$0xf]
        %v2162 = vld [vmem:[%s390 + $0x1c] sm:$0xf]
        %v2163 = vld [vmem:[%s390 + $0x20] sm:$0xf]
        %v2164 = vld [vmem:[%s390 + $0x24] sm:$0xf]
        %v2165 = vld [vmem:[%s390 + $0x28] sm:$0xf]
        %v2166 = vld [vmem:[%s390 + $0x2c] sm:$0xf]
        %v2167 = vld [vmem:[%s390 + $0x30] sm:$0xf]
        %v2168 = vld [vmem:[%s390 + $0x34] sm:$0xf]
        %v2169 = vld [vmem:[%s390 + $0x38] sm:$0xf]
        %v2170 = vld [vmem:[%s390 + $0x3c] sm:$0xf]
        %v2171 = vld [vmem:[%s390 + $0x40] sm:$0xf]
        %v2172 = vld [vmem:[%s390 + $0x44] sm:$0xf]
        %v2173 = vld [vmem:[%s390 + $0x48] sm:$0xf]
        %v2174 = vld [vmem:[%s390 + $0x4c] sm:$0xf]
        %v2175 = vld [vmem:[%s390 + $0x50] sm:$0xf]
        %v2176 = vld [vmem:[%s390 + $0x54] sm:$0xf]
        %v2177 = vld [vmem:[%s390 + $0x58] sm:$0xf]
        %v2178 = vld [vmem:[%s390 + $0x5c] sm:$0xf]
        %v2179 = vld [vmem:[%s390 + $0x60] sm:$0xf]
        %v2180 = vld [vmem:[%s390 + $0x64] sm:$0xf]
        %v2181 = vld [vmem:[%s390 + $0x68] sm:$0xf]
        %v2182 = vld [vmem:[%s390 + $0x6c] sm:$0xf]
        %v2183 = vld [vmem:[%s390 + $0x70] sm:$0xf]
        %v2184 = vld [vmem:[%s390 + $0x74] sm:$0xf]
        %v2185 = vld [vmem:[%s390 + $0x78] sm:$0xf]
        %v2186 = vld [vmem:[%s390 + $0x7c] sm:$0xf]
        %v2219 = vunpack.c.l.b16 %v2155
        %v2220 = vunpack.c.l.b16 %v2156
        %v2221 = vunpack.c.l.b16 %v2157
        %v2222 = vunpack.c.l.b16 %v2158
        %v2223 = vunpack.c.l.b16 %v2159
        %v2224 = vunpack.c.l.b16 %v2160
        %v2225 = vunpack.c.l.b16 %v2161
        %v2226 = vunpack.c.l.b16 %v2162
        %v2227 = vunpack.c.l.b16 %v2163
        %v2228 = vunpack.c.l.b16 %v2164
        %v2229 = vunpack.c.l.b16 %v2165
        %v2230 = vunpack.c.l.b16 %v2166
        %v2231 = vunpack.c.l.b16 %v2167
        %v2232 = vunpack.c.l.b16 %v2168
        %v2233 = vunpack.c.l.b16 %v2169
        %v2234 = vunpack.c.l.b16 %v2170
        %v2235 = vunpack.c.l.b16 %v2171
        %v2236 = vunpack.c.l.b16 %v2172
        %v2237 = vunpack.c.l.b16 %v2173
        %v2238 = vunpack.c.l.b16 %v2174
        %v2239 = vunpack.c.l.b16 %v2175
        %v2240 = vunpack.c.l.b16 %v2176
        %v2241 = vunpack.c.l.b16 %v2177
        %v2242 = vunpack.c.l.b16 %v2178
        %v2243 = vunpack.c.l.b16 %v2179
        %v2244 = vunpack.c.l.b16 %v2180
        %v2245 = vunpack.c.l.b16 %v2181
        %v2246 = vunpack.c.l.b16 %v2182
        %v2247 = vunpack.c.l.b16 %v2183
        %v2248 = vunpack.c.l.b16 %v2184
        %v2249 = vunpack.c.l.b16 %v2185
        %v2250 = vunpack.c.l.b16 %v2186
        %v2251 = vpack.c.b16 %v2220, %v2219
        %v2252 = vpack.c.b16 %v2222, %v2221
        %v2253 = vpack.c.b16 %v2224, %v2223
        %v2254 = vpack.c.b16 %v2226, %v2225
        %v2255 = vpack.c.b16 %v2228, %v2227
        %v2256 = vpack.c.b16 %v2230, %v2229
        %v2257 = vpack.c.b16 %v2232, %v2231
        %v2258 = vpack.c.b16 %v2234, %v2233
        %v2259 = vpack.c.b16 %v2236, %v2235
        %v2260 = vpack.c.b16 %v2238, %v2237
        %v2261 = vpack.c.b16 %v2240, %v2239
        %v2262 = vpack.c.b16 %v2242, %v2241
        %v2263 = vpack.c.b16 %v2244, %v2243
        %v2264 = vpack.c.b16 %v2246, %v2245
        %v2265 = vpack.c.b16 %v2248, %v2247
        %v2266 = vpack.c.b16 %v2250, %v2249
        %2283 = vmatprep.subr.bf16.mxu0 0
        %2284 = vmatpush1.bf16.xpose.msra.mxu0 %v2258
        %2285 = vmatprep.subr.bf16.mxu0 0
        %2286 = vmatpush1.bf16.xpose.msra.mxu0 %v2257
        %2287 = vmatprep.subr.bf16.mxu0 0
        %2288 = vmatpush1.bf16.xpose.msra.mxu0 %v2256
        %2289 = vmatprep.subr.bf16.mxu0 0
        %2290 = vmatpush1.bf16.xpose.msra.mxu0 %v2255
        %2291 = vmatprep.subr.bf16.mxu0 0
        %2292 = vmatpush1.bf16.xpose.msra.mxu0 %v2254
        %2293 = vmatprep.subr.bf16.mxu0 0
        %2294 = vmatpush1.bf16.xpose.msra.mxu0 %v2253
        %2295 = vmatprep.subr.bf16.mxu0 0
        %2296 = vmatpush1.bf16.xpose.msra.mxu0 %v2252
        %2297 = vmatprep.subr.bf16.mxu0 0
        %2298 = vmatpush1.bf16.xpose.msra.mxu0 %v2251
        %2299 = vmatprep.subr.bf16.mxu0 0
        %2300 = vmatpush2.bf16.xpose.msra.mxu0 %v2266
        %2301 = vmatprep.subr.bf16.mxu0 0
        %2302 = vmatpush2.bf16.xpose.msra.mxu0 %v2265
        %2303 = vmatprep.subr.bf16.mxu0 0
        %2304 = vmatpush2.bf16.xpose.msra.mxu0 %v2264
        %2305 = vmatprep.subr.bf16.mxu0 0
        %2306 = vmatpush2.bf16.xpose.msra.mxu0 %v2263
        %2307 = vmatprep.subr.bf16.mxu0 0
        %2308 = vmatpush2.bf16.xpose.msra.mxu0 %v2262
        %2309 = vmatprep.subr.bf16.mxu0 0
        %2310 = vmatpush2.bf16.xpose.msra.mxu0 %v2261
        %2311 = vmatprep.subr.bf16.mxu0 0
        %2312 = vmatpush2.bf16.xpose.msra.mxu0 %v2260
        %2313 = vmatprep.subr.bf16.mxu0 0
        %2314 = vmatpush2.bf16.xpose.msra.mxu0 %v2259
        %2315 = vmatprep.mubr.bf16.mxu0 0
        %2316 = vmatmul.mubr.bf16.gmra.mxu0 %v2154
        %v2317 = vpop.f32.mrf.mxu0
        %v2318 = vadd.f32 0.0, %v2317
        %v2319 = vpop.f32.mrf.mxu0
        %v2320 = vadd.f32 0.0, %v2319
        %v2321 = vpop.f32.mrf.mxu0
        %v2322 = vpop.f32.mrf.mxu0
        %2323 = vdwg.mxu0
        %2324 = vst [vmem:[%s431] sm:$0xff] %v2318
        %2325 = vst [vmem:[%s431 + $0x8] sm:$0xff] %v2320
        %s2326 = sand.u32 %s232, 1
        %s2327 = scalar_lea.sflag [#allocation5], %s2326
        %s2328 = sand.u32 %s232, 1
        %s2329 = smul.addr %s2328, 16
        %s2330 = scalar_lea.vmem [#allocation12], %s2329
        // Predicated region
        $region77: #{tpu_custom_call.1} parent=51 // pred_check
          %p2331 = pneg %p242
        $region78: #{tpu_custom_call.1} parent=51 // pred_check_branch
          %2333 = sbr.rel (%p2331) target = $region80
        $region79: #{tpu_custom_call.1} parent=51 // pred_region
          %s2334 = smul.u32 2, %s32
          %s2336 = ssub.s32 256, 256
          %2337 = vsyncadd %s2327, %s2336
          %s2338 = smul.addr %s31, 4
          %s2339 = sadd.s32 %s2334, %s2338
          %s2340 = smul.addr %s2339, 128
          %s2341 = scalar_lea.hbm %s8, %s2340
          %s2343 = sshll.u32 %s2330, 4
          %s2344 = int_to_ptr.vmem [resolvable:$true] %s2343
          %2346 = dma.vmem_to_hbm [thread:$0]  %s2344, 256, %s2341, %s2327
        $region80: #{tpu_custom_call.1} parent=51 // pred_fallthru
          _
      $region52: #{tpu_custom_call.1} parent=5 // pred_fallthru
        _
      %p2347 = scmp.le.s32.totalorder 2, %s22
      // Predicated region
      $region81: #{tpu_custom_call.1} parent=5 // pred_check
        %p2348 = pneg %p2347
      $region82: #{tpu_custom_call.1} parent=5 // pred_check_branch
        %2350 = sbr.rel (%p2348) target = $region84
      $region83: #{tpu_custom_call.1} parent=5 // pred_region
        %s2351 = ssub.s32 %s22, 2
        // Predicated region
        $region85: #{tpu_custom_call.1} parent=83 // pred_check
          %p2352 = pneg %p248
        $region86: #{tpu_custom_call.1} parent=83 // pred_check_branch
          %2354 = sbr.rel (%p2352) target = $region88
        $region87: #{tpu_custom_call.1} parent=83 // pred_region
          %s2355 = sand.u32 %s233, 1
          %s2356 = scalar_lea.sflag [#allocation5], %s2355
          %s2357 = sand.u32 %s233, 1
          %s2358 = smul.addr %s2357, 16
          %s2359 = scalar_lea.vmem [#allocation12], %s2358
          %2360 = dma.done %s2356, 256
        $region88: #{tpu_custom_call.1} parent=83 // pred_fallthru
          _
      $region84: #{tpu_custom_call.1} parent=5 // pred_fallthru
        _
    $region6: #{tpu_custom_call.1} parent=1 // loop_footer
      %s26 = sadd.s32 1, %s22
    $region7: #{tpu_custom_call.1} parent=1 // loop_footer_branch
      %21 = sbr.rel target = $region3
    $region8: #{tpu_custom_call.1} parent=1 // loop_exit
      _
    %2361 = vsyncpa [#allocation4], 1
    %s2362 = scalar_lea.sflag [#allocation4], 1
    %2363 = vsyncpa %s2362, 1
    %2364 = vsyncpa [#allocation7], 1
    %2365 = vsyncpa [#allocation10], 1
    %2366 = vsyncpa [#allocation5], 1
    %s2367 = scalar_lea.sflag [#allocation5], 1
    %2368 = vsyncpa %s2367, 1

</llo_original>
